<compile_context>
chip_gen: v7x
topology: tpu7x:2x2x1
jax: 0.10.0
libtpu: 0.0.40
codegen_flags: <defaults>
</compile_context>

<pallas_src>
import functools
import math

import jax
import jax.numpy as jnp
from jax import lax
from jax.experimental import pallas as pl
from jax.experimental.pallas import tpu as pltpu


def _temporal_pool_kernel(x_ref, w_ref, o_ref, *, norm):
    # x_ref : (N_BLK, t, P_BLK, c_in)   -- natural x layout, n and p blocked
    # w_ref : (P_BLK, c_in, c_out)      -- resident across the inner n steps
    # o_ref : (P_BLK, N_BLK, c_out)     -- lane-dense output (c_out on lanes)
    t = x_ref.shape[1]
    inv_t = 1.0 / float(t)

    # Temporal sum: unrolled accumulate over t ref-slices keeps exactly one
    # (N_BLK, P_BLK, c_in) f32 accumulator live instead of materialising an
    # f32 copy of the whole (N, t, P, C) block (matters for bf16 x).
    xs = x_ref[:, 0, :, :].astype(jnp.float32)
    for k in range(1, t):
        xs = xs + x_ref[:, k, :, :].astype(jnp.float32)

    # One relayout so the part axis leads, then a single batched contraction
    # (p as the MXU batch dim) -- no per-part cross-sublane extracts.
    xs = pltpu.einshape("npc->pnc", xs)                        # (P, N, c_in) f32

    w = w_ref[...]
    out = jnp.einsum("pnc,pcd->pnd", xs.astype(w.dtype), w,
                     preferred_element_type=jnp.float32)       # (P, N, c_out) f32

    if norm:
        # F.normalize(fc_bin, dim=1) is a per-(p, c_out) column scale:
        #   1 / max(||w||_2, 1e-12) == rsqrt(max(sum(w^2), 1e-24)),
        # so apply it to the matmul RESULT using the weight slab already in
        # VMEM (no HBM rewrite of fc_bin). The reduce + rsqrt land on XLU/EUP
        # slots that are otherwise idle in this HBM-bound kernel.
        sq = jnp.sum(jnp.square(w.astype(jnp.float32)), axis=1,
                     keepdims=True)                            # (P, 1, c_out)
        scale = lax.rsqrt(jnp.maximum(sq, 1e-24)) * inv_t      # (P, 1, c_out)
    else:
        scale = inv_t                                          # mean's 1/t, fused

    o_ref[...] = (out * scale).astype(o_ref.dtype)


def _step_vmem_bytes(nb, pb, t, c_in, c_out, x_isz, w_isz, norm):
    x_blk = nb * t * pb * c_in * x_isz
    w_blk = pb * c_in * c_out * w_isz
    o_blk = pb * nb * c_out * x_isz
    # f32 temporaries live inside the kernel (temporal accumulator, matmul
    # result, optional f32 weight-square for the norm path when w is bf16).
    tmp = nb * pb * c_in * 4 + pb * nb * c_out * 4
    if norm:
        tmp += pb * c_out * 4 + (pb * c_in * c_out * 4 if w_isz < 4 else 0)
    return 2 * (x_blk + w_blk + o_blk) + tmp   # 2x: double-buffered pipeline


def _pick_blocks(n, t, p, c_in, c_out, x_isz, w_isz, norm, budget=32 << 20):
    """Pick (N_BLK, P_BLK) against a v7x-conservative 32 MiB VMEM budget.

    Preference: all parts resident (weight slab DMA'd once per part block),
    then an n block giving >= 4 (else >= 2) inner steps so compute/writeback
    pipelines under the next step's DMA. All candidates respect the (8, 128)
    block rule (multiple-of-8 or full dim on the second-minor block dims).
    """
    def mult8_divisors(m):
        return [d for d in range(8, m, 8) if m % d == 0]

    p_cands = [p] + sorted(mult8_divisors(p), reverse=True)
    n_cands = [n] + sorted(mult8_divisors(n), reverse=True)

    for pb in p_cands:
        fitting = [nb for nb in n_cands
                   if _step_vmem_bytes(nb, pb, t, c_in, c_out,
                                       x_isz, w_isz, norm) <= budget]
        if not fitting:
            continue
        for min_steps in (4, 2):
            deep = [nb for nb in fitting if n // nb >= min_steps]
            if deep:
                return max(deep), pb
        return max(fitting), pb
    # Last resort: smallest blocks; the compiler will report if even this OOMs.
    return min(n_cands), min(p_cands)


def temporal_pool(x, fc_bin, norm=False):
    """x: [n, t, p, c_in], fc_bin: [p, c_in, c_out] -> out: [n, c_out, p]."""
    n, t, p, c_in = x.shape
    p_w, c_in_w, c_out = fc_bin.shape
    assert p == p_w and c_in == c_in_w

    x_isz = jnp.dtype(x.dtype).itemsize
    w_isz = jnp.dtype(fc_bin.dtype).itemsize
    n_blk, p_blk = _pick_blocks(n, t, p, c_in, c_out, x_isz, w_isz, norm)
    grid = (p // p_blk, n // n_blk)   # part blocks OUTER, n blocks INNER

    # Advisory cost for XLA's scheduling of the surrounding glue.
    flops = n * t * p * c_in + 2 * n * p * c_in * c_out
    if norm:
        flops += 2 * p * c_in * c_out
    bytes_accessed = (x.size * x_isz + fc_bin.size * w_isz
                      + p * n * c_out * x_isz)

    # Explicit VMEM limit sized from the real per-step footprint (v7x: 64 MiB
    # physical / 32 MiB default scoped is the tightest generation).
    need = _step_vmem_bytes(n_blk, p_blk, t, c_in, c_out, x_isz, w_isz, norm)
    vmem_limit = int(min(48 << 20, max(16 << 20, need + (2 << 20))))

    kernel = functools.partial(_temporal_pool_kernel, norm=norm)

    out_pnc = pl.pallas_call(
        kernel,
        out_shape=jax.ShapeDtypeStruct((p, n, c_out), x.dtype),
        grid_spec=pltpu.PrefetchScalarGridSpec(
            num_scalar_prefetch=0,
            grid=grid,
            in_specs=[
                # x in its natural [n, t, p, c_in] layout; n and p blocked.
                # Last-two block dims = (p_blk, c_in): multiple-of-8 / full.
                pl.BlockSpec((n_blk, t, p_blk, c_in),
                             lambda pi, ni: (ni, 0, pi, 0)),
                # Weight slab: block index depends only on the OUTER part
                # axis, so it is DMA'd once per part block, not per n step.
                pl.BlockSpec((p_blk, c_in, c_out),
                             lambda pi, ni: (pi, 0, 0)),
            ],
            out_specs=pl.BlockSpec((p_blk, n_blk, c_out),
                                   lambda pi, ni: (pi, ni, 0)),
        ),
        compiler_params=pltpu.CompilerParams(
            dimension_semantics=("parallel", "parallel"),
            vmem_limit_bytes=vmem_limit),
        cost_estimate=pl.CostEstimate(
            flops=flops,
            transcendentals=(p * c_out if norm else 0),
            bytes_accessed=bytes_accessed),
    )(x, fc_bin)

    # [p, n, c_out] -> [n, c_out, p]  (matches out.permute(1, 2, 0)); touches
    # t x less data than the input, pure wrapper glue.
    return jnp.transpose(out_pnc, (1, 2, 0))


def init_fc_bin(key, parts_num, in_channels, out_channels, dtype=jnp.float32):
    # xavier_uniform_ on a (p, c_in, c_out) tensor:
    #   fan_in  = size(1) * prod(size[2:]) = c_in * c_out
    #   fan_out = size(0) * prod(size[2:]) = p * c_out
    fan_in = in_channels * out_channels
    fan_out = parts_num * out_channels
    bound = math.sqrt(6.0 / (fan_in + fan_out))
    return jax.random.uniform(
        key, (parts_num, in_channels, out_channels),
        minval=-bound, maxval=bound, dtype=dtype)


def temporal_pool_ref(x, fc_bin, norm=False):
    # Pure-JAX reference mirroring the PyTorch forward exactly.
    xm = jnp.mean(x, axis=1)                       # [n, p, c_in]
    xm = jnp.transpose(xm, (1, 0, 2))              # [p, n, c_in]
    w = fc_bin
    if norm:
        denom = jnp.sqrt(jnp.sum(w * w, axis=1, keepdims=True))
        w = w / jnp.maximum(denom, 1e-12)
    out = jnp.einsum("pnc,pcd->pnd", xm, w)        # [p, n, c_out]
    return jnp.transpose(out, (1, 2, 0))           # [n, c_out, p]


if __name__ == "__main__":
    # Small shapes consistent with the module: n=4, t_merge=8, p=16,
    # c_in=128, c_out=128 (lane-friendly stand-ins for 512/256).
    n, t, parts_num, c_in, c_out = 4, 8, 16, 128, 128

    key = jax.random.PRNGKey(0)
    kx, kw = jax.random.split(key)
    x = jax.random.normal(kx, (n, t, parts_num, c_in), dtype=jnp.float32)
    fc_bin = init_fc_bin(kw, parts_num, c_in, c_out)

    out = jax.block_until_ready(temporal_pool(x, fc_bin, norm=False))
    ref = temporal_pool_ref(x, fc_bin, norm=False)
    assert out.shape == (n, c_out, parts_num), out.shape
    assert jnp.allclose(out, ref, atol=1e-4, rtol=1e-4), "mismatch vs reference"

    # norm=True path: normalization now happens inside the kernel (no HBM
    # rewrite of fc_bin); check it against the reference too.
    out_n = jax.block_until_ready(temporal_pool(x, fc_bin, norm=True))
    ref_n = temporal_pool_ref(x, fc_bin, norm=True)
    assert jnp.allclose(out_n, ref_n, atol=1e-4, rtol=1e-4), "norm mismatch"

    print("KERNEL_OK")
</pallas_src>

<mosaic_0001>
module attributes {stable_mosaic.version = 11 : i64} {
  func.func @_temporal_pool_kernel(%arg0: i32, %arg1: i32, %arg2: memref<4x8x16x128xf32, #tpu.memory_space<vmem>>, %arg3: memref<16x128x128xf32, #tpu.memory_space<vmem>>, %arg4: memref<16x4x128xf32, #tpu.memory_space<vmem>>) attributes {dimension_semantics = [#tpu.dimension_semantics<parallel>, #tpu.dimension_semantics<parallel>], iteration_bounds = array<i64: 1, 1>, scalar_prefetch = 0 : i64, scratch_operands = 0 : i64, tpu.core_type = #tpu.core_type<tc>, window_params = [{transform_indices = @transform_0, window_bounds = array<i64: 4, 8, 16, 128>}, {transform_indices = @transform_1, window_bounds = array<i64: 16, 128, 128>}, {transform_indices = @transform_2, window_bounds = array<i64: 16, 4, 128>}]} {
    %c0 = arith.constant 0 : index
    %c0_0 = arith.constant 0 : index
    %c0_1 = arith.constant 0 : index
    %c0_2 = arith.constant 0 : index
    %0 = vector.load %arg2[%c0, %c0_0, %c0_1, %c0_2] : memref<4x8x16x128xf32, #tpu.memory_space<vmem>>, vector<4x1x16x128xf32>
    %1 = vector.shape_cast %0 : vector<4x1x16x128xf32> to vector<4x16x128xf32>
    %c0_3 = arith.constant 0 : index
    %c1 = arith.constant 1 : index
    %c0_4 = arith.constant 0 : index
    %c0_5 = arith.constant 0 : index
    %2 = vector.load %arg2[%c0_3, %c1, %c0_4, %c0_5] : memref<4x8x16x128xf32, #tpu.memory_space<vmem>>, vector<4x1x16x128xf32>
    %3 = vector.shape_cast %2 : vector<4x1x16x128xf32> to vector<4x16x128xf32>
    %4 = arith.addf %1, %3 : vector<4x16x128xf32>
    %c0_6 = arith.constant 0 : index
    %c2 = arith.constant 2 : index
    %c0_7 = arith.constant 0 : index
    %c0_8 = arith.constant 0 : index
    %5 = vector.load %arg2[%c0_6, %c2, %c0_7, %c0_8] : memref<4x8x16x128xf32, #tpu.memory_space<vmem>>, vector<4x1x16x128xf32>
    %6 = vector.shape_cast %5 : vector<4x1x16x128xf32> to vector<4x16x128xf32>
    %7 = arith.addf %4, %6 : vector<4x16x128xf32>
    %c0_9 = arith.constant 0 : index
    %c3 = arith.constant 3 : index
    %c0_10 = arith.constant 0 : index
    %c0_11 = arith.constant 0 : index
    %8 = vector.load %arg2[%c0_9, %c3, %c0_10, %c0_11] : memref<4x8x16x128xf32, #tpu.memory_space<vmem>>, vector<4x1x16x128xf32>
    %9 = vector.shape_cast %8 : vector<4x1x16x128xf32> to vector<4x16x128xf32>
    %10 = arith.addf %7, %9 : vector<4x16x128xf32>
    %c0_12 = arith.constant 0 : index
    %c4 = arith.constant 4 : index
    %c0_13 = arith.constant 0 : index
    %c0_14 = arith.constant 0 : index
    %11 = vector.load %arg2[%c0_12, %c4, %c0_13, %c0_14] : memref<4x8x16x128xf32, #tpu.memory_space<vmem>>, vector<4x1x16x128xf32>
    %12 = vector.shape_cast %11 : vector<4x1x16x128xf32> to vector<4x16x128xf32>
    %13 = arith.addf %10, %12 : vector<4x16x128xf32>
    %c0_15 = arith.constant 0 : index
    %c5 = arith.constant 5 : index
    %c0_16 = arith.constant 0 : index
    %c0_17 = arith.constant 0 : index
    %14 = vector.load %arg2[%c0_15, %c5, %c0_16, %c0_17] : memref<4x8x16x128xf32, #tpu.memory_space<vmem>>, vector<4x1x16x128xf32>
    %15 = vector.shape_cast %14 : vector<4x1x16x128xf32> to vector<4x16x128xf32>
    %16 = arith.addf %13, %15 : vector<4x16x128xf32>
    %c0_18 = arith.constant 0 : index
    %c6 = arith.constant 6 : index
    %c0_19 = arith.constant 0 : index
    %c0_20 = arith.constant 0 : index
    %17 = vector.load %arg2[%c0_18, %c6, %c0_19, %c0_20] : memref<4x8x16x128xf32, #tpu.memory_space<vmem>>, vector<4x1x16x128xf32>
    %18 = vector.shape_cast %17 : vector<4x1x16x128xf32> to vector<4x16x128xf32>
    %19 = arith.addf %16, %18 : vector<4x16x128xf32>
    %c0_21 = arith.constant 0 : index
    %c7 = arith.constant 7 : index
    %c0_22 = arith.constant 0 : index
    %c0_23 = arith.constant 0 : index
    %20 = vector.load %arg2[%c0_21, %c7, %c0_22, %c0_23] : memref<4x8x16x128xf32, #tpu.memory_space<vmem>>, vector<4x1x16x128xf32>
    %21 = vector.shape_cast %20 : vector<4x1x16x128xf32> to vector<4x16x128xf32>
    %22 = arith.addf %19, %21 : vector<4x16x128xf32>
    %23 = tpu.transpose %22, [1, 0, 2] : vector<4x16x128xf32> -> vector<16x4x128xf32>
    %c0_24 = arith.constant 0 : index
    %c0_25 = arith.constant 0 : index
    %c0_26 = arith.constant 0 : index
    %24 = vector.load %arg3[%c0_24, %c0_25, %c0_26] : memref<16x128x128xf32, #tpu.memory_space<vmem>>, vector<16x128x128xf32>
    "tpu.trace_start"() <{level = 10 : i32, message = "pnc,pcd->pnd"}> : () -> ()
    %cst = arith.constant dense<0.000000e+00> : vector<16x4x128xf32>
    %25 = tpu.matmul %23, %24, %cst {dimension_numbers = #tpu.dot_dimension_numbers<[2], [1], [1], [2], [0, 0, 0, 1, 1, 2], [0], [0]>} : vector<16x4x128xf32>, vector<16x128x128xf32>, vector<16x4x128xf32> -> vector<16x4x128xf32>
    "tpu.trace_stop"() : () -> ()
    %cst_27 = arith.constant 1.250000e-01 : f32
    %26 = vector.broadcast %cst_27 : f32 to vector<16x4x128xf32>
    %27 = arith.mulf %25, %26 : vector<16x4x128xf32>
    %c0_28 = arith.constant 0 : index
    %c0_29 = arith.constant 0 : index
    %c0_30 = arith.constant 0 : index
    %28 = vector.load %arg4[%c0_28, %c0_29, %c0_30] : memref<16x4x128xf32, #tpu.memory_space<vmem>>, vector<16x4x128xf32>
    tpu.vector_store %arg4[%c0_28, %c0_29, %c0_30], %27 {strides = array<i32>} : memref<16x4x128xf32, #tpu.memory_space<vmem>>, vector<16x4x128xf32>,
    return
  }
  func.func @transform_0(%arg0: i32, %arg1: i32) -> (i32, i32, i32, i32) {
    %c0_i32 = arith.constant 0 : i32
    %c0_i32_0 = arith.constant 0 : i32
    %c0_i32_1 = arith.constant 0 : i32
    return %arg1, %c0_i32, %arg0, %c0_i32_0 : i32, i32, i32, i32
  }
  func.func @transform_1(%arg0: i32, %arg1: i32) -> (i32, i32, i32) {
    %c0_i32 = arith.constant 0 : i32
    %c0_i32_0 = arith.constant 0 : i32
    %c0_i32_1 = arith.constant 0 : i32
    return %arg0, %c0_i32, %c0_i32_0 : i32, i32, i32
  }
  func.func @transform_2(%arg0: i32, %arg1: i32) -> (i32, i32, i32) {
    %c0_i32 = arith.constant 0 : i32
    %c0_i32_0 = arith.constant 0 : i32
    return %arg0, %arg1, %c0_i32 : i32, i32, i32
  }
}

</mosaic_0001>

<llo_original>
// kernel: tpu_custom_call.1
$region0: #{tpu_custom_call.1}
  #allocation0 [shape = 'u32[]', space=smem, size = 0x4, offset = 0x4, fixed_abs, tag = 'smem constant byte address 0x4 - core index']
  #allocation1 [shape = 'u32[144,128]{1,0:T(1,128)}', space=vmem, size = 0x12000, scoped, tag = 'internal scratch']
  %s0 = inlined_call_operand.hbm [shape: f32[4,8,16,128], index: 0, kind: input, shape index: {}]
  %s1 = inlined_call_operand.hbm [shape: f32[16,128,128], index: 1, kind: input, shape index: {}]
  %s2 = inlined_call_operand.hbm [shape: f32[16,4,128], index: 2, kind: output, shape index: {}]
  %s3 = sld [smem:[#allocation0]]
  $region26: #{tpu_custom_call.1} parent=0
    _
  %s5 = ssub.s32 1, %s3
  %s6 = scalar_select 0, %s5, %s3
  $region1: #{tpu_custom_call.1} parent=0
    #allocation2 [shape = 'u8[262144]{0}', space=vmem, size = 0x40000, scoped, tag = 'input window, operand 0, single buffered']
    #allocation3 [shape = 's32[1]{0}', space=sflag, size = 0x4, scoped, tag = 'scoped memory for tpu_custom_call.1']
    #allocation4 [shape = 's32[1]{0}', space=sflag, size = 0x4, scoped, tag = 'scoped memory for tpu_custom_call.1']
    #allocation5 [shape = 'u8[1048576]{0}', space=vmem, size = 0x100000, scoped, tag = 'input window, operand 1, single buffered']
    #allocation6 [shape = 's32[1]{0}', space=sflag, size = 0x4, scoped, tag = 'scoped memory for tpu_custom_call.1']
    #allocation7 [shape = 'u8[32768]{0}', space=vmem, size = 0x8000, scoped, tag = 'output window, operand 0, single buffered']
    %7 = vsyncpa [#allocation3], 0
    %8 = vsyncpa [#allocation6], 0
    %9 = vsyncpa [#allocation4], 0
    // Predicated region
    $region2: #{tpu_custom_call.1} parent=1 // pred_check
      _
    $region3: #{tpu_custom_call.1} parent=1 // pred_check_branch
      %11 = sbr.rel (0) target = $region5
    $region4: #{tpu_custom_call.1} parent=1 // pred_region
      %s13 = ssub.s32 8192, 8192
      %14 = vsyncadd [#allocation3], %s13
      %s15 = sshll.u32 [#allocation2], 4
      %s16 = int_to_ptr.vmem [resolvable:$true] %s15
      %21 = dma.hbm_to_vmem [thread:$0]  %s0, 8192, %s16, [#allocation3], 128, 128, 8
    $region5: #{tpu_custom_call.1} parent=1 // pred_fallthru
      _
    // Predicated region
    $region6: #{tpu_custom_call.1} parent=1 // pred_check
      _
    $region7: #{tpu_custom_call.1} parent=1 // pred_check_branch
      %23 = sbr.rel (0) target = $region9
    $region8: #{tpu_custom_call.1} parent=1 // pred_region
      %s25 = ssub.s32 32768, 32768
      %26 = vsyncadd [#allocation6], %s25
      %s27 = sshll.u32 [#allocation5], 4
      %s28 = int_to_ptr.vmem [resolvable:$true] %s27
      %33 = dma.hbm_to_vmem [thread:$0]  %s1, 32768, %s28, [#allocation6], 128, 128, 8
    $region9: #{tpu_custom_call.1} parent=1 // pred_fallthru
      _
    // Predicated region
    $region10: #{tpu_custom_call.1} parent=1 // pred_check
      _
    $region11: #{tpu_custom_call.1} parent=1 // pred_check_branch
      %35 = sbr.rel (0) target = $region13
    $region12: #{tpu_custom_call.1} parent=1 // pred_region
      %36 = dma.done [#allocation3], 8192
    $region13: #{tpu_custom_call.1} parent=1 // pred_fallthru
      _
    // Predicated region
    $region14: #{tpu_custom_call.1} parent=1 // pred_check
      _
    $region15: #{tpu_custom_call.1} parent=1 // pred_check_branch
      %38 = sbr.rel (0) target = $region17
    $region16: #{tpu_custom_call.1} parent=1 // pred_region
      %39 = dma.done [#allocation6], 32768
    $region17: #{tpu_custom_call.1} parent=1 // pred_fallthru
      _
    %v40 = vld [vmem:[#allocation2] sm:$0xff]
    %v41 = vld [vmem:[#allocation2 + $0x8] sm:$0xff]
    %v42 = vld [vmem:[#allocation2 + $0x80] sm:$0xff]
    %v43 = vld [vmem:[#allocation2 + $0x88] sm:$0xff]
    %v44 = vld [vmem:[#allocation2 + $0x100] sm:$0xff]
    %v45 = vld [vmem:[#allocation2 + $0x108] sm:$0xff]
    %v46 = vld [vmem:[#allocation2 + $0x180] sm:$0xff]
    %v47 = vld [vmem:[#allocation2 + $0x188] sm:$0xff]
    %s48 = scalar_lea.vmem [#allocation2], 16
    %v49 = vld [vmem:[%s48] sm:$0xff]
    %v50 = vld [vmem:[%s48 + $0x8] sm:$0xff]
    %v51 = vld [vmem:[%s48 + $0x80] sm:$0xff]
    %v52 = vld [vmem:[%s48 + $0x88] sm:$0xff]
    %v53 = vld [vmem:[%s48 + $0x100] sm:$0xff]
    %v54 = vld [vmem:[%s48 + $0x108] sm:$0xff]
    %v55 = vld [vmem:[%s48 + $0x180] sm:$0xff]
    %v56 = vld [vmem:[%s48 + $0x188] sm:$0xff]
    %v57 = vadd.f32 %v40, %v49
    %v58 = vadd.f32 %v41, %v50
    %v59 = vadd.f32 %v42, %v51
    %v60 = vadd.f32 %v43, %v52
    %v61 = vadd.f32 %v44, %v53
    %v62 = vadd.f32 %v45, %v54
    %v63 = vadd.f32 %v46, %v55
    %v64 = vadd.f32 %v47, %v56
    %s65 = scalar_lea.vmem [#allocation2], 32
    %v66 = vld [vmem:[%s65] sm:$0xff]
    %v67 = vld [vmem:[%s65 + $0x8] sm:$0xff]
    %v68 = vld [vmem:[%s65 + $0x80] sm:$0xff]
    %v69 = vld [vmem:[%s65 + $0x88] sm:$0xff]
    %v70 = vld [vmem:[%s65 + $0x100] sm:$0xff]
    %v71 = vld [vmem:[%s65 + $0x108] sm:$0xff]
    %v72 = vld [vmem:[%s65 + $0x180] sm:$0xff]
    %v73 = vld [vmem:[%s65 + $0x188] sm:$0xff]
    %v74 = vadd.f32 %v57, %v66
    %v75 = vadd.f32 %v58, %v67
    %v76 = vadd.f32 %v59, %v68
    %v77 = vadd.f32 %v60, %v69
    %v78 = vadd.f32 %v61, %v70
    %v79 = vadd.f32 %v62, %v71
    %v80 = vadd.f32 %v63, %v72
    %v81 = vadd.f32 %v64, %v73
    %s82 = scalar_lea.vmem [#allocation2], 48
    %v83 = vld [vmem:[%s82] sm:$0xff]
    %v84 = vld [vmem:[%s82 + $0x8] sm:$0xff]
    %v85 = vld [vmem:[%s82 + $0x80] sm:$0xff]
    %v86 = vld [vmem:[%s82 + $0x88] sm:$0xff]
    %v87 = vld [vmem:[%s82 + $0x100] sm:$0xff]
    %v88 = vld [vmem:[%s82 + $0x108] sm:$0xff]
    %v89 = vld [vmem:[%s82 + $0x180] sm:$0xff]
    %v90 = vld [vmem:[%s82 + $0x188] sm:$0xff]
    %v91 = vadd.f32 %v74, %v83
    %v92 = vadd.f32 %v75, %v84
    %v93 = vadd.f32 %v76, %v85
    %v94 = vadd.f32 %v77, %v86
    %v95 = vadd.f32 %v78, %v87
    %v96 = vadd.f32 %v79, %v88
    %v97 = vadd.f32 %v80, %v89
    %v98 = vadd.f32 %v81, %v90
    %s99 = scalar_lea.vmem [#allocation2], 64
    %v100 = vld [vmem:[%s99] sm:$0xff]
    %v101 = vld [vmem:[%s99 + $0x8] sm:$0xff]
    %v102 = vld [vmem:[%s99 + $0x80] sm:$0xff]
    %v103 = vld [vmem:[%s99 + $0x88] sm:$0xff]
    %v104 = vld [vmem:[%s99 + $0x100] sm:$0xff]
    %v105 = vld [vmem:[%s99 + $0x108] sm:$0xff]
    %v106 = vld [vmem:[%s99 + $0x180] sm:$0xff]
    %v107 = vld [vmem:[%s99 + $0x188] sm:$0xff]
    %v108 = vadd.f32 %v91, %v100
    %v109 = vadd.f32 %v92, %v101
    %v110 = vadd.f32 %v93, %v102
    %v111 = vadd.f32 %v94, %v103
    %v112 = vadd.f32 %v95, %v104
    %v113 = vadd.f32 %v96, %v105
    %v114 = vadd.f32 %v97, %v106
    %v115 = vadd.f32 %v98, %v107
    %s116 = scalar_lea.vmem [#allocation2], 80
    %v117 = vld [vmem:[%s116] sm:$0xff]
    %v118 = vld [vmem:[%s116 + $0x8] sm:$0xff]
    %v119 = vld [vmem:[%s116 + $0x80] sm:$0xff]
    %v120 = vld [vmem:[%s116 + $0x88] sm:$0xff]
    %v121 = vld [vmem:[%s116 + $0x100] sm:$0xff]
    %v122 = vld [vmem:[%s116 + $0x108] sm:$0xff]
    %v123 = vld [vmem:[%s116 + $0x180] sm:$0xff]
    %v124 = vld [vmem:[%s116 + $0x188] sm:$0xff]
    %v125 = vadd.f32 %v108, %v117
    %v126 = vadd.f32 %v109, %v118
    %v127 = vadd.f32 %v110, %v119
    %v128 = vadd.f32 %v111, %v120
    %v129 = vadd.f32 %v112, %v121
    %v130 = vadd.f32 %v113, %v122
    %v131 = vadd.f32 %v114, %v123
    %v132 = vadd.f32 %v115, %v124
    %s133 = scalar_lea.vmem [#allocation2], 96
    %v134 = vld [vmem:[%s133] sm:$0xff]
    %v135 = vld [vmem:[%s133 + $0x8] sm:$0xff]
    %v136 = vld [vmem:[%s133 + $0x80] sm:$0xff]
    %v137 = vld [vmem:[%s133 + $0x88] sm:$0xff]
    %v138 = vld [vmem:[%s133 + $0x100] sm:$0xff]
    %v139 = vld [vmem:[%s133 + $0x108] sm:$0xff]
    %v140 = vld [vmem:[%s133 + $0x180] sm:$0xff]
    %v141 = vld [vmem:[%s133 + $0x188] sm:$0xff]
    %v142 = vadd.f32 %v125, %v134
    %v143 = vadd.f32 %v126, %v135
    %v144 = vadd.f32 %v127, %v136
    %v145 = vadd.f32 %v128, %v137
    %v146 = vadd.f32 %v129, %v138
    %v147 = vadd.f32 %v130, %v139
    %v148 = vadd.f32 %v131, %v140
    %v149 = vadd.f32 %v132, %v141
    %s150 = scalar_lea.vmem [#allocation2], 112
    %v151 = vld [vmem:[%s150] sm:$0xff]
    %v152 = vld [vmem:[%s150 + $0x8] sm:$0xff]
    %v153 = vld [vmem:[%s150 + $0x80] sm:$0xff]
    %v154 = vld [vmem:[%s150 + $0x88] sm:$0xff]
    %v155 = vld [vmem:[%s150 + $0x100] sm:$0xff]
    %v156 = vld [vmem:[%s150 + $0x108] sm:$0xff]
    %v157 = vld [vmem:[%s150 + $0x180] sm:$0xff]
    %v158 = vld [vmem:[%s150 + $0x188] sm:$0xff]
    %v159 = vadd.f32 %v142, %v151
    %v160 = vadd.f32 %v143, %v152
    %v161 = vadd.f32 %v144, %v153
    %v162 = vadd.f32 %v145, %v154
    %v163 = vadd.f32 %v146, %v155
    %v164 = vadd.f32 %v147, %v156
    %v165 = vadd.f32 %v148, %v157
    %v166 = vadd.f32 %v149, %v158
    %v167 = vcombine.low %v159, %v163
    %v168 = vcombine.high %v159, %v163
    %v170 = vunpack.c.l.s4 1983009808
    %v171 = vunpack.c.0.s8 %v170
    %v172 = vlaneseq
    %v173 = vshrl.u32 %v172, 7
    %v174 = vsub.s32 %v171, %v173
    %v175 = vrot.slane %v167, %v174
    %v177 = vunpack.c.l.s4 1983009808
    %v178 = vunpack.c.0.s8 %v177
    %v179 = vlaneseq
    %v180 = vshrl.u32 %v179, 7
    %v181 = vsub.s32 %v178, %v180
    %v182 = vrot.slane %v168, %v181
    %v183 = vcombine.low %v161, %v165
    %v184 = vcombine.high %v161, %v165
    %v186 = vunpack.c.l.s4 1983009808
    %v187 = vunpack.c.0.s8 %v186
    %v188 = vlaneseq
    %v189 = vshrl.u32 %v188, 7
    %v190 = vsub.s32 %v187, %v189
    %v191 = vrot.slane %v183, %v190
    %v193 = vunpack.c.l.s4 1983009808
    %v194 = vunpack.c.0.s8 %v193
    %v195 = vlaneseq
    %v196 = vshrl.u32 %v195, 7
    %v197 = vsub.s32 %v194, %v196
    %v198 = vrot.slane %v184, %v197
    %v199 = vcombine.low %v175, %v191
    %v200 = vcombine.high %v175, %v191
    %v202 = vunpack.c.l.s4 1934713408
    %v203 = vunpack.c.0.s8 %v202
    %v204 = vlaneseq
    %v205 = vshrl.u32 %v204, 7
    %v206 = vsub.s32 %v203, %v205
    %v207 = vrot.slane %v199, %v206
    %v209 = vunpack.c.l.s4 1934713408
    %v210 = vunpack.c.0.s8 %v209
    %v211 = vlaneseq
    %v212 = vshrl.u32 %v211, 7
    %v213 = vsub.s32 %v210, %v212
    %v214 = vrot.slane %v200, %v213
    %v215 = vcombine.low %v182, %v198
    %v216 = vcombine.high %v182, %v198
    %v218 = vunpack.c.l.s4 1934713408
    %v219 = vunpack.c.0.s8 %v218
    %v220 = vlaneseq
    %v221 = vshrl.u32 %v220, 7
    %v222 = vsub.s32 %v219, %v221
    %v223 = vrot.slane %v215, %v222
    %v225 = vunpack.c.l.s4 1934713408
    %v226 = vunpack.c.0.s8 %v225
    %v227 = vlaneseq
    %v228 = vshrl.u32 %v227, 7
    %v229 = vsub.s32 %v226, %v228
    %v230 = vrot.slane %v216, %v229
    %v231 = vcombine.high %v207, 0.0
    %v232 = vcombine.high %v214, 0.0
    %v233 = vcombine.high %v223, 0.0
    %v234 = vcombine.high %v230, 0.0
    %v235 = vcombine.low %v160, %v164
    %v236 = vcombine.high %v160, %v164
    %v238 = vunpack.c.l.s4 1983009808
    %v239 = vunpack.c.0.s8 %v238
    %v240 = vlaneseq
    %v241 = vshrl.u32 %v240, 7
    %v242 = vsub.s32 %v239, %v241
    %v243 = vrot.slane %v235, %v242
    %v245 = vunpack.c.l.s4 1983009808
    %v246 = vunpack.c.0.s8 %v245
    %v247 = vlaneseq
    %v248 = vshrl.u32 %v247, 7
    %v249 = vsub.s32 %v246, %v248
    %v250 = vrot.slane %v236, %v249
    %v251 = vcombine.low %v162, %v166
    %v252 = vcombine.high %v162, %v166
    %v254 = vunpack.c.l.s4 1983009808
    %v255 = vunpack.c.0.s8 %v254
    %v256 = vlaneseq
    %v257 = vshrl.u32 %v256, 7
    %v258 = vsub.s32 %v255, %v257
    %v259 = vrot.slane %v251, %v258
    %v261 = vunpack.c.l.s4 1983009808
    %v262 = vunpack.c.0.s8 %v261
    %v263 = vlaneseq
    %v264 = vshrl.u32 %v263, 7
    %v265 = vsub.s32 %v262, %v264
    %v266 = vrot.slane %v252, %v265
    %v267 = vcombine.low %v243, %v259
    %v268 = vcombine.high %v243, %v259
    %v270 = vunpack.c.l.s4 1934713408
    %v271 = vunpack.c.0.s8 %v270
    %v272 = vlaneseq
    %v273 = vshrl.u32 %v272, 7
    %v274 = vsub.s32 %v271, %v273
    %v275 = vrot.slane %v267, %v274
    %v277 = vunpack.c.l.s4 1934713408
    %v278 = vunpack.c.0.s8 %v277
    %v279 = vlaneseq
    %v280 = vshrl.u32 %v279, 7
    %v281 = vsub.s32 %v278, %v280
    %v282 = vrot.slane %v268, %v281
    %v283 = vcombine.low %v250, %v266
    %v284 = vcombine.high %v250, %v266
    %v286 = vunpack.c.l.s4 1934713408
    %v287 = vunpack.c.0.s8 %v286
    %v288 = vlaneseq
    %v289 = vshrl.u32 %v288, 7
    %v290 = vsub.s32 %v287, %v289
    %v291 = vrot.slane %v283, %v290
    %v293 = vunpack.c.l.s4 1934713408
    %v294 = vunpack.c.0.s8 %v293
    %v295 = vlaneseq
    %v296 = vshrl.u32 %v295, 7
    %v297 = vsub.s32 %v294, %v296
    %v298 = vrot.slane %v284, %v297
    %v299 = vcombine.high %v275, 0.0
    %v300 = vcombine.high %v282, 0.0
    %v301 = vcombine.high %v291, 0.0
    %v302 = vcombine.high %v298, 0.0
    %v303 = vld [vmem:[#allocation5] sm:$0xff]
    %v304 = vld [vmem:[#allocation5 + $0x8] sm:$0xff]
    %v305 = vld [vmem:[#allocation5 + $0x10] sm:$0xff]
    %v306 = vld [vmem:[#allocation5 + $0x18] sm:$0xff]
    %v307 = vld [vmem:[#allocation5 + $0x20] sm:$0xff]
    %v308 = vld [vmem:[#allocation5 + $0x28] sm:$0xff]
    %v309 = vld [vmem:[#allocation5 + $0x30] sm:$0xff]
    %v310 = vld [vmem:[#allocation5 + $0x38] sm:$0xff]
    %v311 = vld [vmem:[#allocation5 + $0x40] sm:$0xff]
    %v312 = vld [vmem:[#allocation5 + $0x48] sm:$0xff]
    %v313 = vld [vmem:[#allocation5 + $0x50] sm:$0xff]
    %v314 = vld [vmem:[#allocation5 + $0x58] sm:$0xff]
    %v315 = vld [vmem:[#allocation5 + $0x60] sm:$0xff]
    %v316 = vld [vmem:[#allocation5 + $0x68] sm:$0xff]
    %v317 = vld [vmem:[#allocation5 + $0x70] sm:$0xff]
    %v318 = vld [vmem:[#allocation5 + $0x78] sm:$0xff]
    %v319 = vld [vmem:[#allocation5 + $0x80] sm:$0xff]
    %v320 = vld [vmem:[#allocation5 + $0x88] sm:$0xff]
    %v321 = vld [vmem:[#allocation5 + $0x90] sm:$0xff]
    %v322 = vld [vmem:[#allocation5 + $0x98] sm:$0xff]
    %v323 = vld [vmem:[#allocation5 + $0xa0] sm:$0xff]
    %v324 = vld [vmem:[#allocation5 + $0xa8] sm:$0xff]
    %v325 = vld [vmem:[#allocation5 + $0xb0] sm:$0xff]
    %v326 = vld [vmem:[#allocation5 + $0xb8] sm:$0xff]
    %v327 = vld [vmem:[#allocation5 + $0xc0] sm:$0xff]
    %v328 = vld [vmem:[#allocation5 + $0xc8] sm:$0xff]
    %v329 = vld [vmem:[#allocation5 + $0xd0] sm:$0xff]
    %v330 = vld [vmem:[#allocation5 + $0xd8] sm:$0xff]
    %v331 = vld [vmem:[#allocation5 + $0xe0] sm:$0xff]
    %v332 = vld [vmem:[#allocation5 + $0xe8] sm:$0xff]
    %v333 = vld [vmem:[#allocation5 + $0xf0] sm:$0xff]
    %v334 = vld [vmem:[#allocation5 + $0xf8] sm:$0xff]
    %v335 = vld [vmem:[#allocation5 + $0x100] sm:$0xff]
    %v336 = vld [vmem:[#allocation5 + $0x108] sm:$0xff]
    %v337 = vld [vmem:[#allocation5 + $0x110] sm:$0xff]
    %v338 = vld [vmem:[#allocation5 + $0x118] sm:$0xff]
    %v339 = vld [vmem:[#allocation5 + $0x120] sm:$0xff]
    %v340 = vld [vmem:[#allocation5 + $0x128] sm:$0xff]
    %v341 = vld [vmem:[#allocation5 + $0x130] sm:$0xff]
    %v342 = vld [vmem:[#allocation5 + $0x138] sm:$0xff]
    %v343 = vld [vmem:[#allocation5 + $0x140] sm:$0xff]
    %v344 = vld [vmem:[#allocation5 + $0x148] sm:$0xff]
    %v345 = vld [vmem:[#allocation5 + $0x150] sm:$0xff]
    %v346 = vld [vmem:[#allocation5 + $0x158] sm:$0xff]
    %v347 = vld [vmem:[#allocation5 + $0x160] sm:$0xff]
    %v348 = vld [vmem:[#allocation5 + $0x168] sm:$0xff]
    %v349 = vld [vmem:[#allocation5 + $0x170] sm:$0xff]
    %v350 = vld [vmem:[#allocation5 + $0x178] sm:$0xff]
    %v351 = vld [vmem:[#allocation5 + $0x180] sm:$0xff]
    %v352 = vld [vmem:[#allocation5 + $0x188] sm:$0xff]
    %v353 = vld [vmem:[#allocation5 + $0x190] sm:$0xff]
    %v354 = vld [vmem:[#allocation5 + $0x198] sm:$0xff]
    %v355 = vld [vmem:[#allocation5 + $0x1a0] sm:$0xff]
    %v356 = vld [vmem:[#allocation5 + $0x1a8] sm:$0xff]
    %v357 = vld [vmem:[#allocation5 + $0x1b0] sm:$0xff]
    %v358 = vld [vmem:[#allocation5 + $0x1b8] sm:$0xff]
    %v359 = vld [vmem:[#allocation5 + $0x1c0] sm:$0xff]
    %v360 = vld [vmem:[#allocation5 + $0x1c8] sm:$0xff]
    %v361 = vld [vmem:[#allocation5 + $0x1d0] sm:$0xff]
    %v362 = vld [vmem:[#allocation5 + $0x1d8] sm:$0xff]
    %v363 = vld [vmem:[#allocation5 + $0x1e0] sm:$0xff]
    %v364 = vld [vmem:[#allocation5 + $0x1e8] sm:$0xff]
    %v365 = vld [vmem:[#allocation5 + $0x1f0] sm:$0xff]
    %v366 = vld [vmem:[#allocation5 + $0x1f8] sm:$0xff]
    %v367 = vld [vmem:[#allocation5 + $0x200] sm:$0xff]
    %v368 = vld [vmem:[#allocation5 + $0x208] sm:$0xff]
    %v369 = vld [vmem:[#allocation5 + $0x210] sm:$0xff]
    %v370 = vld [vmem:[#allocation5 + $0x218] sm:$0xff]
    %v371 = vld [vmem:[#allocation5 + $0x220] sm:$0xff]
    %v372 = vld [vmem:[#allocation5 + $0x228] sm:$0xff]
    %v373 = vld [vmem:[#allocation5 + $0x230] sm:$0xff]
    %v374 = vld [vmem:[#allocation5 + $0x238] sm:$0xff]
    %v375 = vld [vmem:[#allocation5 + $0x240] sm:$0xff]
    %v376 = vld [vmem:[#allocation5 + $0x248] sm:$0xff]
    %v377 = vld [vmem:[#allocation5 + $0x250] sm:$0xff]
    %v378 = vld [vmem:[#allocation5 + $0x258] sm:$0xff]
    %v379 = vld [vmem:[#allocation5 + $0x260] sm:$0xff]
    %v380 = vld [vmem:[#allocation5 + $0x268] sm:$0xff]
    %v381 = vld [vmem:[#allocation5 + $0x270] sm:$0xff]
    %v382 = vld [vmem:[#allocation5 + $0x278] sm:$0xff]
    %v383 = vld [vmem:[#allocation5 + $0x280] sm:$0xff]
    %v384 = vld [vmem:[#allocation5 + $0x288] sm:$0xff]
    %v385 = vld [vmem:[#allocation5 + $0x290] sm:$0xff]
    %v386 = vld [vmem:[#allocation5 + $0x298] sm:$0xff]
    %v387 = vld [vmem:[#allocation5 + $0x2a0] sm:$0xff]
    %v388 = vld [vmem:[#allocation5 + $0x2a8] sm:$0xff]
    %v389 = vld [vmem:[#allocation5 + $0x2b0] sm:$0xff]
    %v390 = vld [vmem:[#allocation5 + $0x2b8] sm:$0xff]
    %v391 = vld [vmem:[#allocation5 + $0x2c0] sm:$0xff]
    %v392 = vld [vmem:[#allocation5 + $0x2c8] sm:$0xff]
    %v393 = vld [vmem:[#allocation5 + $0x2d0] sm:$0xff]
    %v394 = vld [vmem:[#allocation5 + $0x2d8] sm:$0xff]
    %v395 = vld [vmem:[#allocation5 + $0x2e0] sm:$0xff]
    %v396 = vld [vmem:[#allocation5 + $0x2e8] sm:$0xff]
    %v397 = vld [vmem:[#allocation5 + $0x2f0] sm:$0xff]
    %v398 = vld [vmem:[#allocation5 + $0x2f8] sm:$0xff]
    %v399 = vld [vmem:[#allocation5 + $0x300] sm:$0xff]
    %v400 = vld [vmem:[#allocation5 + $0x308] sm:$0xff]
    %v401 = vld [vmem:[#allocation5 + $0x310] sm:$0xff]
    %v402 = vld [vmem:[#allocation5 + $0x318] sm:$0xff]
    %v403 = vld [vmem:[#allocation5 + $0x320] sm:$0xff]
    %v404 = vld [vmem:[#allocation5 + $0x328] sm:$0xff]
    %v405 = vld [vmem:[#allocation5 + $0x330] sm:$0xff]
    %v406 = vld [vmem:[#allocation5 + $0x338] sm:$0xff]
    %v407 = vld [vmem:[#allocation5 + $0x340] sm:$0xff]
    %v408 = vld [vmem:[#allocation5 + $0x348] sm:$0xff]
    %v409 = vld [vmem:[#allocation5 + $0x350] sm:$0xff]
    %v410 = vld [vmem:[#allocation5 + $0x358] sm:$0xff]
    %v411 = vld [vmem:[#allocation5 + $0x360] sm:$0xff]
    %v412 = vld [vmem:[#allocation5 + $0x368] sm:$0xff]
    %v413 = vld [vmem:[#allocation5 + $0x370] sm:$0xff]
    %v414 = vld [vmem:[#allocation5 + $0x378] sm:$0xff]
    %v415 = vld [vmem:[#allocation5 + $0x380] sm:$0xff]
    %v416 = vld [vmem:[#allocation5 + $0x388] sm:$0xff]
    %v417 = vld [vmem:[#allocation5 + $0x390] sm:$0xff]
    %v418 = vld [vmem:[#allocation5 + $0x398] sm:$0xff]
    %v419 = vld [vmem:[#allocation5 + $0x3a0] sm:$0xff]
    %v420 = vld [vmem:[#allocation5 + $0x3a8] sm:$0xff]
    %v421 = vld [vmem:[#allocation5 + $0x3b0] sm:$0xff]
    %v422 = vld [vmem:[#allocation5 + $0x3b8] sm:$0xff]
    %v423 = vld [vmem:[#allocation5 + $0x3c0] sm:$0xff]
    %v424 = vld [vmem:[#allocation5 + $0x3c8] sm:$0xff]
    %v425 = vld [vmem:[#allocation5 + $0x3d0] sm:$0xff]
    %v426 = vld [vmem:[#allocation5 + $0x3d8] sm:$0xff]
    %v427 = vld [vmem:[#allocation5 + $0x3e0] sm:$0xff]
    %v428 = vld [vmem:[#allocation5 + $0x3e8] sm:$0xff]
    %v429 = vld [vmem:[#allocation5 + $0x3f0] sm:$0xff]
    %v430 = vld [vmem:[#allocation5 + $0x3f8] sm:$0xff]
    %v431 = vld [vmem:[#allocation5 + $0x400] sm:$0xff]
    %v432 = vld [vmem:[#allocation5 + $0x408] sm:$0xff]
    %v433 = vld [vmem:[#allocation5 + $0x410] sm:$0xff]
    %v434 = vld [vmem:[#allocation5 + $0x418] sm:$0xff]
    %v435 = vld [vmem:[#allocation5 + $0x420] sm:$0xff]
    %v436 = vld [vmem:[#allocation5 + $0x428] sm:$0xff]
    %v437 = vld [vmem:[#allocation5 + $0x430] sm:$0xff]
    %v438 = vld [vmem:[#allocation5 + $0x438] sm:$0xff]
    %v439 = vld [vmem:[#allocation5 + $0x440] sm:$0xff]
    %v440 = vld [vmem:[#allocation5 + $0x448] sm:$0xff]
    %v441 = vld [vmem:[#allocation5 + $0x450] sm:$0xff]
    %v442 = vld [vmem:[#allocation5 + $0x458] sm:$0xff]
    %v443 = vld [vmem:[#allocation5 + $0x460] sm:$0xff]
    %v444 = vld [vmem:[#allocation5 + $0x468] sm:$0xff]
    %v445 = vld [vmem:[#allocation5 + $0x470] sm:$0xff]
    %v446 = vld [vmem:[#allocation5 + $0x478] sm:$0xff]
    %v447 = vld [vmem:[#allocation5 + $0x480] sm:$0xff]
    %v448 = vld [vmem:[#allocation5 + $0x488] sm:$0xff]
    %v449 = vld [vmem:[#allocation5 + $0x490] sm:$0xff]
    %v450 = vld [vmem:[#allocation5 + $0x498] sm:$0xff]
    %v451 = vld [vmem:[#allocation5 + $0x4a0] sm:$0xff]
    %v452 = vld [vmem:[#allocation5 + $0x4a8] sm:$0xff]
    %v453 = vld [vmem:[#allocation5 + $0x4b0] sm:$0xff]
    %v454 = vld [vmem:[#allocation5 + $0x4b8] sm:$0xff]
    %v455 = vld [vmem:[#allocation5 + $0x4c0] sm:$0xff]
    %v456 = vld [vmem:[#allocation5 + $0x4c8] sm:$0xff]
    %v457 = vld [vmem:[#allocation5 + $0x4d0] sm:$0xff]
    %v458 = vld [vmem:[#allocation5 + $0x4d8] sm:$0xff]
    %v459 = vld [vmem:[#allocation5 + $0x4e0] sm:$0xff]
    %v460 = vld [vmem:[#allocation5 + $0x4e8] sm:$0xff]
    %v461 = vld [vmem:[#allocation5 + $0x4f0] sm:$0xff]
    %v462 = vld [vmem:[#allocation5 + $0x4f8] sm:$0xff]
    %v463 = vld [vmem:[#allocation5 + $0x500] sm:$0xff]
    %v464 = vld [vmem:[#allocation5 + $0x508] sm:$0xff]
    %v465 = vld [vmem:[#allocation5 + $0x510] sm:$0xff]
    %v466 = vld [vmem:[#allocation5 + $0x518] sm:$0xff]
    %v467 = vld [vmem:[#allocation5 + $0x520] sm:$0xff]
    %v468 = vld [vmem:[#allocation5 + $0x528] sm:$0xff]
    %v469 = vld [vmem:[#allocation5 + $0x530] sm:$0xff]
    %v470 = vld [vmem:[#allocation5 + $0x538] sm:$0xff]
    %v471 = vld [vmem:[#allocation5 + $0x540] sm:$0xff]
    %v472 = vld [vmem:[#allocation5 + $0x548] sm:$0xff]
    %v473 = vld [vmem:[#allocation5 + $0x550] sm:$0xff]
    %v474 = vld [vmem:[#allocation5 + $0x558] sm:$0xff]
    %v475 = vld [vmem:[#allocation5 + $0x560] sm:$0xff]
    %v476 = vld [vmem:[#allocation5 + $0x568] sm:$0xff]
    %v477 = vld [vmem:[#allocation5 + $0x570] sm:$0xff]
    %v478 = vld [vmem:[#allocation5 + $0x578] sm:$0xff]
    %v479 = vld [vmem:[#allocation5 + $0x580] sm:$0xff]
    %v480 = vld [vmem:[#allocation5 + $0x588] sm:$0xff]
    %v481 = vld [vmem:[#allocation5 + $0x590] sm:$0xff]
    %v482 = vld [vmem:[#allocation5 + $0x598] sm:$0xff]
    %v483 = vld [vmem:[#allocation5 + $0x5a0] sm:$0xff]
    %v484 = vld [vmem:[#allocation5 + $0x5a8] sm:$0xff]
    %v485 = vld [vmem:[#allocation5 + $0x5b0] sm:$0xff]
    %v486 = vld [vmem:[#allocation5 + $0x5b8] sm:$0xff]
    %v487 = vld [vmem:[#allocation5 + $0x5c0] sm:$0xff]
    %v488 = vld [vmem:[#allocation5 + $0x5c8] sm:$0xff]
    %v489 = vld [vmem:[#allocation5 + $0x5d0] sm:$0xff]
    %v490 = vld [vmem:[#allocation5 + $0x5d8] sm:$0xff]
    %v491 = vld [vmem:[#allocation5 + $0x5e0] sm:$0xff]
    %v492 = vld [vmem:[#allocation5 + $0x5e8] sm:$0xff]
    %v493 = vld [vmem:[#allocation5 + $0x5f0] sm:$0xff]
    %v494 = vld [vmem:[#allocation5 + $0x5f8] sm:$0xff]
    %v495 = vld [vmem:[#allocation5 + $0x600] sm:$0xff]
    %v496 = vld [vmem:[#allocation5 + $0x608] sm:$0xff]
    %v497 = vld [vmem:[#allocation5 + $0x610] sm:$0xff]
    %v498 = vld [vmem:[#allocation5 + $0x618] sm:$0xff]
    %v499 = vld [vmem:[#allocation5 + $0x620] sm:$0xff]
    %v500 = vld [vmem:[#allocation5 + $0x628] sm:$0xff]
    %v501 = vld [vmem:[#allocation5 + $0x630] sm:$0xff]
    %v502 = vld [vmem:[#allocation5 + $0x638] sm:$0xff]
    %v503 = vld [vmem:[#allocation5 + $0x640] sm:$0xff]
    %v504 = vld [vmem:[#allocation5 + $0x648] sm:$0xff]
    %v505 = vld [vmem:[#allocation5 + $0x650] sm:$0xff]
    %v506 = vld [vmem:[#allocation5 + $0x658] sm:$0xff]
    %v507 = vld [vmem:[#allocation5 + $0x660] sm:$0xff]
    %v508 = vld [vmem:[#allocation5 + $0x668] sm:$0xff]
    %v509 = vld [vmem:[#allocation5 + $0x670] sm:$0xff]
    %v510 = vld [vmem:[#allocation5 + $0x678] sm:$0xff]
    %v511 = vld [vmem:[#allocation5 + $0x680] sm:$0xff]
    %v512 = vld [vmem:[#allocation5 + $0x688] sm:$0xff]
    %v513 = vld [vmem:[#allocation5 + $0x690] sm:$0xff]
    %v514 = vld [vmem:[#allocation5 + $0x698] sm:$0xff]
    %v515 = vld [vmem:[#allocation5 + $0x6a0] sm:$0xff]
    %v516 = vld [vmem:[#allocation5 + $0x6a8] sm:$0xff]
    %v517 = vld [vmem:[#allocation5 + $0x6b0] sm:$0xff]
    %v518 = vld [vmem:[#allocation5 + $0x6b8] sm:$0xff]
    %v519 = vld [vmem:[#allocation5 + $0x6c0] sm:$0xff]
    %v520 = vld [vmem:[#allocation5 + $0x6c8] sm:$0xff]
    %v521 = vld [vmem:[#allocation5 + $0x6d0] sm:$0xff]
    %v522 = vld [vmem:[#allocation5 + $0x6d8] sm:$0xff]
    %v523 = vld [vmem:[#allocation5 + $0x6e0] sm:$0xff]
    %v524 = vld [vmem:[#allocation5 + $0x6e8] sm:$0xff]
    %v525 = vld [vmem:[#allocation5 + $0x6f0] sm:$0xff]
    %v526 = vld [vmem:[#allocation5 + $0x6f8] sm:$0xff]
    %v527 = vld [vmem:[#allocation5 + $0x700] sm:$0xff]
    %v528 = vld [vmem:[#allocation5 + $0x708] sm:$0xff]
    %v529 = vld [vmem:[#allocation5 + $0x710] sm:$0xff]
    %v530 = vld [vmem:[#allocation5 + $0x718] sm:$0xff]
    %v531 = vld [vmem:[#allocation5 + $0x720] sm:$0xff]
    %v532 = vld [vmem:[#allocation5 + $0x728] sm:$0xff]
    %v533 = vld [vmem:[#allocation5 + $0x730] sm:$0xff]
    %v534 = vld [vmem:[#allocation5 + $0x738] sm:$0xff]
    %v535 = vld [vmem:[#allocation5 + $0x740] sm:$0xff]
    %v536 = vld [vmem:[#allocation5 + $0x748] sm:$0xff]
    %v537 = vld [vmem:[#allocation5 + $0x750] sm:$0xff]
    %v538 = vld [vmem:[#allocation5 + $0x758] sm:$0xff]
    %v539 = vld [vmem:[#allocation5 + $0x760] sm:$0xff]
    %v540 = vld [vmem:[#allocation5 + $0x768] sm:$0xff]
    %v541 = vld [vmem:[#allocation5 + $0x770] sm:$0xff]
    %v542 = vld [vmem:[#allocation5 + $0x778] sm:$0xff]
    %v543 = vld [vmem:[#allocation5 + $0x780] sm:$0xff]
    %v544 = vld [vmem:[#allocation5 + $0x788] sm:$0xff]
    %v545 = vld [vmem:[#allocation5 + $0x790] sm:$0xff]
    %v546 = vld [vmem:[#allocation5 + $0x798] sm:$0xff]
    %v547 = vld [vmem:[#allocation5 + $0x7a0] sm:$0xff]
    %v548 = vld [vmem:[#allocation5 + $0x7a8] sm:$0xff]
    %v549 = vld [vmem:[#allocation5 + $0x7b0] sm:$0xff]
    %v550 = vld [vmem:[#allocation5 + $0x7b8] sm:$0xff]
    %v551 = vld [vmem:[#allocation5 + $0x7c0] sm:$0xff]
    %v552 = vld [vmem:[#allocation5 + $0x7c8] sm:$0xff]
    %v553 = vld [vmem:[#allocation5 + $0x7d0] sm:$0xff]
    %v554 = vld [vmem:[#allocation5 + $0x7d8] sm:$0xff]
    %v555 = vld [vmem:[#allocation5 + $0x7e0] sm:$0xff]
    %v556 = vld [vmem:[#allocation5 + $0x7e8] sm:$0xff]
    %v557 = vld [vmem:[#allocation5 + $0x7f0] sm:$0xff]
    %v558 = vld [vmem:[#allocation5 + $0x7f8] sm:$0xff]
    %559 = vmatprep.subr.mxu0 0.0
    %560 = vmatpush1.msra.mxu0 %v303
    %561 = vmatprep.subr.mxu0 0.0
    %562 = vmatpush1.msra.mxu0 %v304
    %563 = vmatprep.subr.mxu0 0.0
    %564 = vmatpush1.msra.mxu0 %v305
    %565 = vmatprep.subr.mxu0 0.0
    %566 = vmatpush1.msra.mxu0 %v306
    %567 = vmatprep.subr.mxu0 0.0
    %568 = vmatpush1.msra.mxu0 %v307
    %569 = vmatprep.subr.mxu0 0.0
    %570 = vmatpush1.msra.mxu0 %v308
    %571 = vmatprep.subr.mxu0 0.0
    %572 = vmatpush1.msra.mxu0 %v309
    %573 = vmatprep.subr.mxu0 0.0
    %574 = vmatpush1.msra.mxu0 %v310
    %575 = vmatprep.subr.mxu0 0.0
    %576 = vmatpush1.msra.mxu0 %v311
    %577 = vmatprep.subr.mxu0 0.0
    %578 = vmatpush1.msra.mxu0 %v312
    %579 = vmatprep.subr.mxu0 0.0
    %580 = vmatpush1.msra.mxu0 %v313
    %581 = vmatprep.subr.mxu0 0.0
    %582 = vmatpush1.msra.mxu0 %v314
    %583 = vmatprep.subr.mxu0 0.0
    %584 = vmatpush1.msra.mxu0 %v315
    %585 = vmatprep.subr.mxu0 0.0
    %586 = vmatpush1.msra.mxu0 %v316
    %587 = vmatprep.subr.mxu0 0.0
    %588 = vmatpush1.msra.mxu0 %v317
    %589 = vmatprep.subr.mxu0 0.0
    %590 = vmatpush1.msra.mxu0 %v318
    %591 = vmatprep.subr.mxu0 0.0
    %592 = vmatpush1.msra.mxu0 0.0
    %593 = vmatprep.subr.mxu0 0.0
    %594 = vmatpush1.msra.mxu0 0.0
    %595 = vmatprep.subr.mxu0 0.0
    %596 = vmatpush1.msra.mxu0 0.0
    %597 = vmatprep.subr.mxu0 0.0
    %598 = vmatpush1.msra.mxu0 0.0
    %599 = vmatprep.subr.mxu0 0.0
    %600 = vmatpush1.msra.mxu0 0.0
    %601 = vmatprep.subr.mxu0 0.0
    %602 = vmatpush1.msra.mxu0 0.0
    %603 = vmatprep.subr.mxu0 0.0
    %604 = vmatpush1.msra.mxu0 0.0
    %605 = vmatprep.subr.mxu0 0.0
    %606 = vmatpush1.msra.mxu0 0.0
    %607 = vmatprep.subr.mxu0 0.0
    %608 = vmatpush1.msra.mxu0 0.0
    %609 = vmatprep.subr.mxu0 0.0
    %610 = vmatpush1.msra.mxu0 0.0
    %611 = vmatprep.subr.mxu0 0.0
    %612 = vmatpush1.msra.mxu0 0.0
    %613 = vmatprep.subr.mxu0 0.0
    %614 = vmatpush1.msra.mxu0 0.0
    %615 = vmatprep.subr.mxu0 0.0
    %616 = vmatpush1.msra.mxu0 0.0
    %617 = vmatprep.subr.mxu0 0.0
    %618 = vmatpush1.msra.mxu0 0.0
    %619 = vmatprep.subr.mxu0 0.0
    %620 = vmatpush1.msra.mxu0 0.0
    %621 = vmatprep.subr.mxu0 0.0
    %622 = vmatpush1.msra.mxu0 0.0
    %623 = vmatprep.mubr.f32.mxu0 0.0
    %624 = vmatmul.mubr.f32.gmra.mrb[0].mxu0 %v207
    %v625 = vpop.f32.mrb[0].mxu0
    %v626 = vadd.f32 0.0, %v625
    %v627 = vpop.f32.mrb[0].mxu0
    %628 = vdwg.mxu0
    %629 = vmatprep.subr.mxu0 0.0
    %630 = vmatpush1.msra.mxu0 %v319
    %631 = vmatprep.subr.mxu0 0.0
    %632 = vmatpush1.msra.mxu0 %v320
    %633 = vmatprep.subr.mxu0 0.0
    %634 = vmatpush1.msra.mxu0 %v321
    %635 = vmatprep.subr.mxu0 0.0
    %636 = vmatpush1.msra.mxu0 %v322
    %637 = vmatprep.subr.mxu0 0.0
    %638 = vmatpush1.msra.mxu0 %v323
    %639 = vmatprep.subr.mxu0 0.0
    %640 = vmatpush1.msra.mxu0 %v324
    %641 = vmatprep.subr.mxu0 0.0
    %642 = vmatpush1.msra.mxu0 %v325
    %643 = vmatprep.subr.mxu0 0.0
    %644 = vmatpush1.msra.mxu0 %v326
    %645 = vmatprep.subr.mxu0 0.0
    %646 = vmatpush1.msra.mxu0 %v327
    %647 = vmatprep.subr.mxu0 0.0
    %648 = vmatpush1.msra.mxu0 %v328
    %649 = vmatprep.subr.mxu0 0.0
    %650 = vmatpush1.msra.mxu0 %v329
    %651 = vmatprep.subr.mxu0 0.0
    %652 = vmatpush1.msra.mxu0 %v330
    %653 = vmatprep.subr.mxu0 0.0
    %654 = vmatpush1.msra.mxu0 %v331
    %655 = vmatprep.subr.mxu0 0.0
    %656 = vmatpush1.msra.mxu0 %v332
    %657 = vmatprep.subr.mxu0 0.0
    %658 = vmatpush1.msra.mxu0 %v333
    %659 = vmatprep.subr.mxu0 0.0
    %660 = vmatpush1.msra.mxu0 %v334
    %661 = vmatprep.subr.mxu0 0.0
    %662 = vmatpush1.msra.mxu0 0.0
    %663 = vmatprep.subr.mxu0 0.0
    %664 = vmatpush1.msra.mxu0 0.0
    %665 = vmatprep.subr.mxu0 0.0
    %666 = vmatpush1.msra.mxu0 0.0
    %667 = vmatprep.subr.mxu0 0.0
    %668 = vmatpush1.msra.mxu0 0.0
    %669 = vmatprep.subr.mxu0 0.0
    %670 = vmatpush1.msra.mxu0 0.0
    %671 = vmatprep.subr.mxu0 0.0
    %672 = vmatpush1.msra.mxu0 0.0
    %673 = vmatprep.subr.mxu0 0.0
    %674 = vmatpush1.msra.mxu0 0.0
    %675 = vmatprep.subr.mxu0 0.0
    %676 = vmatpush1.msra.mxu0 0.0
    %677 = vmatprep.subr.mxu0 0.0
    %678 = vmatpush1.msra.mxu0 0.0
    %679 = vmatprep.subr.mxu0 0.0
    %680 = vmatpush1.msra.mxu0 0.0
    %681 = vmatprep.subr.mxu0 0.0
    %682 = vmatpush1.msra.mxu0 0.0
    %683 = vmatprep.subr.mxu0 0.0
    %684 = vmatpush1.msra.mxu0 0.0
    %685 = vmatprep.subr.mxu0 0.0
    %686 = vmatpush1.msra.mxu0 0.0
    %687 = vmatprep.subr.mxu0 0.0
    %688 = vmatpush1.msra.mxu0 0.0
    %689 = vmatprep.subr.mxu0 0.0
    %690 = vmatpush1.msra.mxu0 0.0
    %691 = vmatprep.subr.mxu0 0.0
    %692 = vmatpush1.msra.mxu0 0.0
    %693 = vmatprep.mubr.f32.mxu0 0.0
    %694 = vmatmul.mubr.f32.gmra.mrb[0].mxu0 %v231
    %v695 = vpop.f32.mrb[0].mxu0
    %v696 = vadd.f32 0.0, %v695
    %v697 = vpop.f32.mrb[0].mxu0
    %698 = vdwg.mxu0
    %699 = vmatprep.subr.mxu0 0.0
    %700 = vmatpush1.msra.mxu0 %v335
    %701 = vmatprep.subr.mxu0 0.0
    %702 = vmatpush1.msra.mxu0 %v336
    %703 = vmatprep.subr.mxu0 0.0
    %704 = vmatpush1.msra.mxu0 %v337
    %705 = vmatprep.subr.mxu0 0.0
    %706 = vmatpush1.msra.mxu0 %v338
    %707 = vmatprep.subr.mxu0 0.0
    %708 = vmatpush1.msra.mxu0 %v339
    %709 = vmatprep.subr.mxu0 0.0
    %710 = vmatpush1.msra.mxu0 %v340
    %711 = vmatprep.subr.mxu0 0.0
    %712 = vmatpush1.msra.mxu0 %v341
    %713 = vmatprep.subr.mxu0 0.0
    %714 = vmatpush1.msra.mxu0 %v342
    %715 = vmatprep.subr.mxu0 0.0
    %716 = vmatpush1.msra.mxu0 %v343
    %717 = vmatprep.subr.mxu0 0.0
    %718 = vmatpush1.msra.mxu0 %v344
    %719 = vmatprep.subr.mxu0 0.0
    %720 = vmatpush1.msra.mxu0 %v345
    %721 = vmatprep.subr.mxu0 0.0
    %722 = vmatpush1.msra.mxu0 %v346
    %723 = vmatprep.subr.mxu0 0.0
    %724 = vmatpush1.msra.mxu0 %v347
    %725 = vmatprep.subr.mxu0 0.0
    %726 = vmatpush1.msra.mxu0 %v348
    %727 = vmatprep.subr.mxu0 0.0
    %728 = vmatpush1.msra.mxu0 %v349
    %729 = vmatprep.subr.mxu0 0.0
    %730 = vmatpush1.msra.mxu0 %v350
    %731 = vmatprep.subr.mxu0 0.0
    %732 = vmatpush1.msra.mxu0 0.0
    %733 = vmatprep.subr.mxu0 0.0
    %734 = vmatpush1.msra.mxu0 0.0
    %735 = vmatprep.subr.mxu0 0.0
    %736 = vmatpush1.msra.mxu0 0.0
    %737 = vmatprep.subr.mxu0 0.0
    %738 = vmatpush1.msra.mxu0 0.0
    %739 = vmatprep.subr.mxu0 0.0
    %740 = vmatpush1.msra.mxu0 0.0
    %741 = vmatprep.subr.mxu0 0.0
    %742 = vmatpush1.msra.mxu0 0.0
    %743 = vmatprep.subr.mxu0 0.0
    %744 = vmatpush1.msra.mxu0 0.0
    %745 = vmatprep.subr.mxu0 0.0
    %746 = vmatpush1.msra.mxu0 0.0
    %747 = vmatprep.subr.mxu0 0.0
    %748 = vmatpush1.msra.mxu0 0.0
    %749 = vmatprep.subr.mxu0 0.0
    %750 = vmatpush1.msra.mxu0 0.0
    %751 = vmatprep.subr.mxu0 0.0
    %752 = vmatpush1.msra.mxu0 0.0
    %753 = vmatprep.subr.mxu0 0.0
    %754 = vmatpush1.msra.mxu0 0.0
    %755 = vmatprep.subr.mxu0 0.0
    %756 = vmatpush1.msra.mxu0 0.0
    %757 = vmatprep.subr.mxu0 0.0
    %758 = vmatpush1.msra.mxu0 0.0
    %759 = vmatprep.subr.mxu0 0.0
    %760 = vmatpush1.msra.mxu0 0.0
    %761 = vmatprep.subr.mxu0 0.0
    %762 = vmatpush1.msra.mxu0 0.0
    %763 = vmatprep.mubr.f32.mxu0 0.0
    %764 = vmatmul.mubr.f32.gmra.mrb[0].mxu0 %v214
    %v765 = vpop.f32.mrb[0].mxu0
    %v766 = vadd.f32 0.0, %v765
    %v767 = vpop.f32.mrb[0].mxu0
    %768 = vdwg.mxu0
    %769 = vmatprep.subr.mxu0 0.0
    %770 = vmatpush1.msra.mxu0 %v351
    %771 = vmatprep.subr.mxu0 0.0
    %772 = vmatpush1.msra.mxu0 %v352
    %773 = vmatprep.subr.mxu0 0.0
    %774 = vmatpush1.msra.mxu0 %v353
    %775 = vmatprep.subr.mxu0 0.0
    %776 = vmatpush1.msra.mxu0 %v354
    %777 = vmatprep.subr.mxu0 0.0
    %778 = vmatpush1.msra.mxu0 %v355
    %779 = vmatprep.subr.mxu0 0.0
    %780 = vmatpush1.msra.mxu0 %v356
    %781 = vmatprep.subr.mxu0 0.0
    %782 = vmatpush1.msra.mxu0 %v357
    %783 = vmatprep.subr.mxu0 0.0
    %784 = vmatpush1.msra.mxu0 %v358
    %785 = vmatprep.subr.mxu0 0.0
    %786 = vmatpush1.msra.mxu0 %v359
    %787 = vmatprep.subr.mxu0 0.0
    %788 = vmatpush1.msra.mxu0 %v360
    %789 = vmatprep.subr.mxu0 0.0
    %790 = vmatpush1.msra.mxu0 %v361
    %791 = vmatprep.subr.mxu0 0.0
    %792 = vmatpush1.msra.mxu0 %v362
    %793 = vmatprep.subr.mxu0 0.0
    %794 = vmatpush1.msra.mxu0 %v363
    %795 = vmatprep.subr.mxu0 0.0
    %796 = vmatpush1.msra.mxu0 %v364
    %797 = vmatprep.subr.mxu0 0.0
    %798 = vmatpush1.msra.mxu0 %v365
    %799 = vmatprep.subr.mxu0 0.0
    %800 = vmatpush1.msra.mxu0 %v366
    %801 = vmatprep.subr.mxu0 0.0
    %802 = vmatpush1.msra.mxu0 0.0
    %803 = vmatprep.subr.mxu0 0.0
    %804 = vmatpush1.msra.mxu0 0.0
    %805 = vmatprep.subr.mxu0 0.0
    %806 = vmatpush1.msra.mxu0 0.0
    %807 = vmatprep.subr.mxu0 0.0
    %808 = vmatpush1.msra.mxu0 0.0
    %809 = vmatprep.subr.mxu0 0.0
    %810 = vmatpush1.msra.mxu0 0.0
    %811 = vmatprep.subr.mxu0 0.0
    %812 = vmatpush1.msra.mxu0 0.0
    %813 = vmatprep.subr.mxu0 0.0
    %814 = vmatpush1.msra.mxu0 0.0
    %815 = vmatprep.subr.mxu0 0.0
    %816 = vmatpush1.msra.mxu0 0.0
    %817 = vmatprep.subr.mxu0 0.0
    %818 = vmatpush1.msra.mxu0 0.0
    %819 = vmatprep.subr.mxu0 0.0
    %820 = vmatpush1.msra.mxu0 0.0
    %821 = vmatprep.subr.mxu0 0.0
    %822 = vmatpush1.msra.mxu0 0.0
    %823 = vmatprep.subr.mxu0 0.0
    %824 = vmatpush1.msra.mxu0 0.0
    %825 = vmatprep.subr.mxu0 0.0
    %826 = vmatpush1.msra.mxu0 0.0
    %827 = vmatprep.subr.mxu0 0.0
    %828 = vmatpush1.msra.mxu0 0.0
    %829 = vmatprep.subr.mxu0 0.0
    %830 = vmatpush1.msra.mxu0 0.0
    %831 = vmatprep.subr.mxu0 0.0
    %832 = vmatpush1.msra.mxu0 0.0
    %833 = vmatprep.mubr.f32.mxu0 0.0
    %834 = vmatmul.mubr.f32.gmra.mrb[0].mxu0 %v232
    %v835 = vpop.f32.mrb[0].mxu0
    %v836 = vadd.f32 0.0, %v835
    %v837 = vpop.f32.mrb[0].mxu0
    %838 = vdwg.mxu0
    %839 = vmatprep.subr.mxu0 0.0
    %840 = vmatpush1.msra.mxu0 %v367
    %841 = vmatprep.subr.mxu0 0.0
    %842 = vmatpush1.msra.mxu0 %v368
    %843 = vmatprep.subr.mxu0 0.0
    %844 = vmatpush1.msra.mxu0 %v369
    %845 = vmatprep.subr.mxu0 0.0
    %846 = vmatpush1.msra.mxu0 %v370
    %847 = vmatprep.subr.mxu0 0.0
    %848 = vmatpush1.msra.mxu0 %v371
    %849 = vmatprep.subr.mxu0 0.0
    %850 = vmatpush1.msra.mxu0 %v372
    %851 = vmatprep.subr.mxu0 0.0
    %852 = vmatpush1.msra.mxu0 %v373
    %853 = vmatprep.subr.mxu0 0.0
    %854 = vmatpush1.msra.mxu0 %v374
    %855 = vmatprep.subr.mxu0 0.0
    %856 = vmatpush1.msra.mxu0 %v375
    %857 = vmatprep.subr.mxu0 0.0
    %858 = vmatpush1.msra.mxu0 %v376
    %859 = vmatprep.subr.mxu0 0.0
    %860 = vmatpush1.msra.mxu0 %v377
    %861 = vmatprep.subr.mxu0 0.0
    %862 = vmatpush1.msra.mxu0 %v378
    %863 = vmatprep.subr.mxu0 0.0
    %864 = vmatpush1.msra.mxu0 %v379
    %865 = vmatprep.subr.mxu0 0.0
    %866 = vmatpush1.msra.mxu0 %v380
    %867 = vmatprep.subr.mxu0 0.0
    %868 = vmatpush1.msra.mxu0 %v381
    %869 = vmatprep.subr.mxu0 0.0
    %870 = vmatpush1.msra.mxu0 %v382
    %871 = vmatprep.subr.mxu0 0.0
    %872 = vmatpush1.msra.mxu0 0.0
    %873 = vmatprep.subr.mxu0 0.0
    %874 = vmatpush1.msra.mxu0 0.0
    %875 = vmatprep.subr.mxu0 0.0
    %876 = vmatpush1.msra.mxu0 0.0
    %877 = vmatprep.subr.mxu0 0.0
    %878 = vmatpush1.msra.mxu0 0.0
    %879 = vmatprep.subr.mxu0 0.0
    %880 = vmatpush1.msra.mxu0 0.0
    %881 = vmatprep.subr.mxu0 0.0
    %882 = vmatpush1.msra.mxu0 0.0
    %883 = vmatprep.subr.mxu0 0.0
    %884 = vmatpush1.msra.mxu0 0.0
    %885 = vmatprep.subr.mxu0 0.0
    %886 = vmatpush1.msra.mxu0 0.0
    %887 = vmatprep.subr.mxu0 0.0
    %888 = vmatpush1.msra.mxu0 0.0
    %889 = vmatprep.subr.mxu0 0.0
    %890 = vmatpush1.msra.mxu0 0.0
    %891 = vmatprep.subr.mxu0 0.0
    %892 = vmatpush1.msra.mxu0 0.0
    %893 = vmatprep.subr.mxu0 0.0
    %894 = vmatpush1.msra.mxu0 0.0
    %895 = vmatprep.subr.mxu0 0.0
    %896 = vmatpush1.msra.mxu0 0.0
    %897 = vmatprep.subr.mxu0 0.0
    %898 = vmatpush1.msra.mxu0 0.0
    %899 = vmatprep.subr.mxu0 0.0
    %900 = vmatpush1.msra.mxu0 0.0
    %901 = vmatprep.subr.mxu0 0.0
    %902 = vmatpush1.msra.mxu0 0.0
    %903 = vmatprep.mubr.f32.mxu0 0.0
    %904 = vmatmul.mubr.f32.gmra.mrb[0].mxu0 %v223
    %v905 = vpop.f32.mrb[0].mxu0
    %v906 = vadd.f32 0.0, %v905
    %v907 = vpop.f32.mrb[0].mxu0
    %908 = vdwg.mxu0
    %909 = vmatprep.subr.mxu0 0.0
    %910 = vmatpush1.msra.mxu0 %v383
    %911 = vmatprep.subr.mxu0 0.0
    %912 = vmatpush1.msra.mxu0 %v384
    %913 = vmatprep.subr.mxu0 0.0
    %914 = vmatpush1.msra.mxu0 %v385
    %915 = vmatprep.subr.mxu0 0.0
    %916 = vmatpush1.msra.mxu0 %v386
    %917 = vmatprep.subr.mxu0 0.0
    %918 = vmatpush1.msra.mxu0 %v387
    %919 = vmatprep.subr.mxu0 0.0
    %920 = vmatpush1.msra.mxu0 %v388
    %921 = vmatprep.subr.mxu0 0.0
    %922 = vmatpush1.msra.mxu0 %v389
    %923 = vmatprep.subr.mxu0 0.0
    %924 = vmatpush1.msra.mxu0 %v390
    %925 = vmatprep.subr.mxu0 0.0
    %926 = vmatpush1.msra.mxu0 %v391
    %927 = vmatprep.subr.mxu0 0.0
    %928 = vmatpush1.msra.mxu0 %v392
    %929 = vmatprep.subr.mxu0 0.0
    %930 = vmatpush1.msra.mxu0 %v393
    %931 = vmatprep.subr.mxu0 0.0
    %932 = vmatpush1.msra.mxu0 %v394
    %933 = vmatprep.subr.mxu0 0.0
    %934 = vmatpush1.msra.mxu0 %v395
    %935 = vmatprep.subr.mxu0 0.0
    %936 = vmatpush1.msra.mxu0 %v396
    %937 = vmatprep.subr.mxu0 0.0
    %938 = vmatpush1.msra.mxu0 %v397
    %939 = vmatprep.subr.mxu0 0.0
    %940 = vmatpush1.msra.mxu0 %v398
    %941 = vmatprep.subr.mxu0 0.0
    %942 = vmatpush1.msra.mxu0 0.0
    %943 = vmatprep.subr.mxu0 0.0
    %944 = vmatpush1.msra.mxu0 0.0
    %945 = vmatprep.subr.mxu0 0.0
    %946 = vmatpush1.msra.mxu0 0.0
    %947 = vmatprep.subr.mxu0 0.0
    %948 = vmatpush1.msra.mxu0 0.0
    %949 = vmatprep.subr.mxu0 0.0
    %950 = vmatpush1.msra.mxu0 0.0
    %951 = vmatprep.subr.mxu0 0.0
    %952 = vmatpush1.msra.mxu0 0.0
    %953 = vmatprep.subr.mxu0 0.0
    %954 = vmatpush1.msra.mxu0 0.0
    %955 = vmatprep.subr.mxu0 0.0
    %956 = vmatpush1.msra.mxu0 0.0
    %957 = vmatprep.subr.mxu0 0.0
    %958 = vmatpush1.msra.mxu0 0.0
    %959 = vmatprep.subr.mxu0 0.0
    %960 = vmatpush1.msra.mxu0 0.0
    %961 = vmatprep.subr.mxu0 0.0
    %962 = vmatpush1.msra.mxu0 0.0
    %963 = vmatprep.subr.mxu0 0.0
    %964 = vmatpush1.msra.mxu0 0.0
    %965 = vmatprep.subr.mxu0 0.0
    %966 = vmatpush1.msra.mxu0 0.0
    %967 = vmatprep.subr.mxu0 0.0
    %968 = vmatpush1.msra.mxu0 0.0
    %969 = vmatprep.subr.mxu0 0.0
    %970 = vmatpush1.msra.mxu0 0.0
    %971 = vmatprep.subr.mxu0 0.0
    %972 = vmatpush1.msra.mxu0 0.0
    %973 = vmatprep.mubr.f32.mxu0 0.0
    %974 = vmatmul.mubr.f32.gmra.mrb[0].mxu0 %v233
    %v975 = vpop.f32.mrb[0].mxu0
    %v976 = vadd.f32 0.0, %v975
    %v977 = vpop.f32.mrb[0].mxu0
    %978 = vdwg.mxu0
    %979 = vmatprep.subr.mxu0 0.0
    %980 = vmatpush1.msra.mxu0 %v399
    %981 = vmatprep.subr.mxu0 0.0
    %982 = vmatpush1.msra.mxu0 %v400
    %983 = vmatprep.subr.mxu0 0.0
    %984 = vmatpush1.msra.mxu0 %v401
    %985 = vmatprep.subr.mxu0 0.0
    %986 = vmatpush1.msra.mxu0 %v402
    %987 = vmatprep.subr.mxu0 0.0
    %988 = vmatpush1.msra.mxu0 %v403
    %989 = vmatprep.subr.mxu0 0.0
    %990 = vmatpush1.msra.mxu0 %v404
    %991 = vmatprep.subr.mxu0 0.0
    %992 = vmatpush1.msra.mxu0 %v405
    %993 = vmatprep.subr.mxu0 0.0
    %994 = vmatpush1.msra.mxu0 %v406
    %995 = vmatprep.subr.mxu0 0.0
    %996 = vmatpush1.msra.mxu0 %v407
    %997 = vmatprep.subr.mxu0 0.0
    %998 = vmatpush1.msra.mxu0 %v408
    %999 = vmatprep.subr.mxu0 0.0
    %1000 = vmatpush1.msra.mxu0 %v409
    %1001 = vmatprep.subr.mxu0 0.0
    %1002 = vmatpush1.msra.mxu0 %v410
    %1003 = vmatprep.subr.mxu0 0.0
    %1004 = vmatpush1.msra.mxu0 %v411
    %1005 = vmatprep.subr.mxu0 0.0
    %1006 = vmatpush1.msra.mxu0 %v412
    %1007 = vmatprep.subr.mxu0 0.0
    %1008 = vmatpush1.msra.mxu0 %v413
    %1009 = vmatprep.subr.mxu0 0.0
    %1010 = vmatpush1.msra.mxu0 %v414
    %1011 = vmatprep.subr.mxu0 0.0
    %1012 = vmatpush1.msra.mxu0 0.0
    %1013 = vmatprep.subr.mxu0 0.0
    %1014 = vmatpush1.msra.mxu0 0.0
    %1015 = vmatprep.subr.mxu0 0.0
    %1016 = vmatpush1.msra.mxu0 0.0
    %1017 = vmatprep.subr.mxu0 0.0
    %1018 = vmatpush1.msra.mxu0 0.0
    %1019 = vmatprep.subr.mxu0 0.0
    %1020 = vmatpush1.msra.mxu0 0.0
    %1021 = vmatprep.subr.mxu0 0.0
    %1022 = vmatpush1.msra.mxu0 0.0
    %1023 = vmatprep.subr.mxu0 0.0
    %1024 = vmatpush1.msra.mxu0 0.0
    %1025 = vmatprep.subr.mxu0 0.0
    %1026 = vmatpush1.msra.mxu0 0.0
    %1027 = vmatprep.subr.mxu0 0.0
    %1028 = vmatpush1.msra.mxu0 0.0
    %1029 = vmatprep.subr.mxu0 0.0
    %1030 = vmatpush1.msra.mxu0 0.0
    %1031 = vmatprep.subr.mxu0 0.0
    %1032 = vmatpush1.msra.mxu0 0.0
    %1033 = vmatprep.subr.mxu0 0.0
    %1034 = vmatpush1.msra.mxu0 0.0
    %1035 = vmatprep.subr.mxu0 0.0
    %1036 = vmatpush1.msra.mxu0 0.0
    %1037 = vmatprep.subr.mxu0 0.0
    %1038 = vmatpush1.msra.mxu0 0.0
    %1039 = vmatprep.subr.mxu0 0.0
    %1040 = vmatpush1.msra.mxu0 0.0
    %1041 = vmatprep.subr.mxu0 0.0
    %1042 = vmatpush1.msra.mxu0 0.0
    %1043 = vmatprep.mubr.f32.mxu0 0.0
    %1044 = vmatmul.mubr.f32.gmra.mrb[0].mxu0 %v230
    %v1045 = vpop.f32.mrb[0].mxu0
    %v1046 = vadd.f32 0.0, %v1045
    %v1047 = vpop.f32.mrb[0].mxu0
    %1048 = vdwg.mxu0
    %1049 = vmatprep.subr.mxu0 0.0
    %1050 = vmatpush1.msra.mxu0 %v415
    %1051 = vmatprep.subr.mxu0 0.0
    %1052 = vmatpush1.msra.mxu0 %v416
    %1053 = vmatprep.subr.mxu0 0.0
    %1054 = vmatpush1.msra.mxu0 %v417
    %1055 = vmatprep.subr.mxu0 0.0
    %1056 = vmatpush1.msra.mxu0 %v418
    %1057 = vmatprep.subr.mxu0 0.0
    %1058 = vmatpush1.msra.mxu0 %v419
    %1059 = vmatprep.subr.mxu0 0.0
    %1060 = vmatpush1.msra.mxu0 %v420
    %1061 = vmatprep.subr.mxu0 0.0
    %1062 = vmatpush1.msra.mxu0 %v421
    %1063 = vmatprep.subr.mxu0 0.0
    %1064 = vmatpush1.msra.mxu0 %v422
    %1065 = vmatprep.subr.mxu0 0.0
    %1066 = vmatpush1.msra.mxu0 %v423
    %1067 = vmatprep.subr.mxu0 0.0
    %1068 = vmatpush1.msra.mxu0 %v424
    %1069 = vmatprep.subr.mxu0 0.0
    %1070 = vmatpush1.msra.mxu0 %v425
    %1071 = vmatprep.subr.mxu0 0.0
    %1072 = vmatpush1.msra.mxu0 %v426
    %1073 = vmatprep.subr.mxu0 0.0
    %1074 = vmatpush1.msra.mxu0 %v427
    %1075 = vmatprep.subr.mxu0 0.0
    %1076 = vmatpush1.msra.mxu0 %v428
    %1077 = vmatprep.subr.mxu0 0.0
    %1078 = vmatpush1.msra.mxu0 %v429
    %1079 = vmatprep.subr.mxu0 0.0
    %1080 = vmatpush1.msra.mxu0 %v430
    %1081 = vmatprep.subr.mxu0 0.0
    %1082 = vmatpush1.msra.mxu0 0.0
    %1083 = vmatprep.subr.mxu0 0.0
    %1084 = vmatpush1.msra.mxu0 0.0
    %1085 = vmatprep.subr.mxu0 0.0
    %1086 = vmatpush1.msra.mxu0 0.0
    %1087 = vmatprep.subr.mxu0 0.0
    %1088 = vmatpush1.msra.mxu0 0.0
    %1089 = vmatprep.subr.mxu0 0.0
    %1090 = vmatpush1.msra.mxu0 0.0
    %1091 = vmatprep.subr.mxu0 0.0
    %1092 = vmatpush1.msra.mxu0 0.0
    %1093 = vmatprep.subr.mxu0 0.0
    %1094 = vmatpush1.msra.mxu0 0.0
    %1095 = vmatprep.subr.mxu0 0.0
    %1096 = vmatpush1.msra.mxu0 0.0
    %1097 = vmatprep.subr.mxu0 0.0
    %1098 = vmatpush1.msra.mxu0 0.0
    %1099 = vmatprep.subr.mxu0 0.0
    %1100 = vmatpush1.msra.mxu0 0.0
    %1101 = vmatprep.subr.mxu0 0.0
    %1102 = vmatpush1.msra.mxu0 0.0
    %1103 = vmatprep.subr.mxu0 0.0
    %1104 = vmatpush1.msra.mxu0 0.0
    %1105 = vmatprep.subr.mxu0 0.0
    %1106 = vmatpush1.msra.mxu0 0.0
    %1107 = vmatprep.subr.mxu0 0.0
    %1108 = vmatpush1.msra.mxu0 0.0
    %1109 = vmatprep.subr.mxu0 0.0
    %1110 = vmatpush1.msra.mxu0 0.0
    %1111 = vmatprep.subr.mxu0 0.0
    %1112 = vmatpush1.msra.mxu0 0.0
    %1113 = vmatprep.mubr.f32.mxu0 0.0
    %1114 = vmatmul.mubr.f32.gmra.mrb[0].mxu0 %v234
    %v1115 = vpop.f32.mrb[0].mxu0
    %v1116 = vadd.f32 0.0, %v1115
    %v1117 = vpop.f32.mrb[0].mxu0
    %1118 = vdwg.mxu0
    %1119 = vmatprep.subr.mxu0 0.0
    %1120 = vmatpush1.msra.mxu0 %v431
    %1121 = vmatprep.subr.mxu0 0.0
    %1122 = vmatpush1.msra.mxu0 %v432
    %1123 = vmatprep.subr.mxu0 0.0
    %1124 = vmatpush1.msra.mxu0 %v433
    %1125 = vmatprep.subr.mxu0 0.0
    %1126 = vmatpush1.msra.mxu0 %v434
    %1127 = vmatprep.subr.mxu0 0.0
    %1128 = vmatpush1.msra.mxu0 %v435
    %1129 = vmatprep.subr.mxu0 0.0
    %1130 = vmatpush1.msra.mxu0 %v436
    %1131 = vmatprep.subr.mxu0 0.0
    %1132 = vmatpush1.msra.mxu0 %v437
    %1133 = vmatprep.subr.mxu0 0.0
    %1134 = vmatpush1.msra.mxu0 %v438
    %1135 = vmatprep.subr.mxu0 0.0
    %1136 = vmatpush1.msra.mxu0 %v439
    %1137 = vmatprep.subr.mxu0 0.0
    %1138 = vmatpush1.msra.mxu0 %v440
    %1139 = vmatprep.subr.mxu0 0.0
    %1140 = vmatpush1.msra.mxu0 %v441
    %1141 = vmatprep.subr.mxu0 0.0
    %1142 = vmatpush1.msra.mxu0 %v442
    %1143 = vmatprep.subr.mxu0 0.0
    %1144 = vmatpush1.msra.mxu0 %v443
    %1145 = vmatprep.subr.mxu0 0.0
    %1146 = vmatpush1.msra.mxu0 %v444
    %1147 = vmatprep.subr.mxu0 0.0
    %1148 = vmatpush1.msra.mxu0 %v445
    %1149 = vmatprep.subr.mxu0 0.0
    %1150 = vmatpush1.msra.mxu0 %v446
    %1151 = vmatprep.subr.mxu0 0.0
    %1152 = vmatpush1.msra.mxu0 0.0
    %1153 = vmatprep.subr.mxu0 0.0
    %1154 = vmatpush1.msra.mxu0 0.0
    %1155 = vmatprep.subr.mxu0 0.0
    %1156 = vmatpush1.msra.mxu0 0.0
    %1157 = vmatprep.subr.mxu0 0.0
    %1158 = vmatpush1.msra.mxu0 0.0
    %1159 = vmatprep.subr.mxu0 0.0
    %1160 = vmatpush1.msra.mxu0 0.0
    %1161 = vmatprep.subr.mxu0 0.0
    %1162 = vmatpush1.msra.mxu0 0.0
    %1163 = vmatprep.subr.mxu0 0.0
    %1164 = vmatpush1.msra.mxu0 0.0
    %1165 = vmatprep.subr.mxu0 0.0
    %1166 = vmatpush1.msra.mxu0 0.0
    %1167 = vmatprep.subr.mxu0 0.0
    %1168 = vmatpush1.msra.mxu0 0.0
    %1169 = vmatprep.subr.mxu0 0.0
    %1170 = vmatpush1.msra.mxu0 0.0
    %1171 = vmatprep.subr.mxu0 0.0
    %1172 = vmatpush1.msra.mxu0 0.0
    %1173 = vmatprep.subr.mxu0 0.0
    %1174 = vmatpush1.msra.mxu0 0.0
    %1175 = vmatprep.subr.mxu0 0.0
    %1176 = vmatpush1.msra.mxu0 0.0
    %1177 = vmatprep.subr.mxu0 0.0
    %1178 = vmatpush1.msra.mxu0 0.0
    %1179 = vmatprep.subr.mxu0 0.0
    %1180 = vmatpush1.msra.mxu0 0.0
    %1181 = vmatprep.subr.mxu0 0.0
    %1182 = vmatpush1.msra.mxu0 0.0
    %1183 = vmatprep.mubr.f32.mxu0 0.0
    %1184 = vmatmul.mubr.f32.gmra.mrb[0].mxu0 %v275
    %v1185 = vpop.f32.mrb[0].mxu0
    %v1186 = vadd.f32 0.0, %v1185
    %v1187 = vpop.f32.mrb[0].mxu0
    %1188 = vdwg.mxu0
    %1189 = vmatprep.subr.mxu0 0.0
    %1190 = vmatpush1.msra.mxu0 %v447
    %1191 = vmatprep.subr.mxu0 0.0
    %1192 = vmatpush1.msra.mxu0 %v448
    %1193 = vmatprep.subr.mxu0 0.0
    %1194 = vmatpush1.msra.mxu0 %v449
    %1195 = vmatprep.subr.mxu0 0.0
    %1196 = vmatpush1.msra.mxu0 %v450
    %1197 = vmatprep.subr.mxu0 0.0
    %1198 = vmatpush1.msra.mxu0 %v451
    %1199 = vmatprep.subr.mxu0 0.0
    %1200 = vmatpush1.msra.mxu0 %v452
    %1201 = vmatprep.subr.mxu0 0.0
    %1202 = vmatpush1.msra.mxu0 %v453
    %1203 = vmatprep.subr.mxu0 0.0
    %1204 = vmatpush1.msra.mxu0 %v454
    %1205 = vmatprep.subr.mxu0 0.0
    %1206 = vmatpush1.msra.mxu0 %v455
    %1207 = vmatprep.subr.mxu0 0.0
    %1208 = vmatpush1.msra.mxu0 %v456
    %1209 = vmatprep.subr.mxu0 0.0
    %1210 = vmatpush1.msra.mxu0 %v457
    %1211 = vmatprep.subr.mxu0 0.0
    %1212 = vmatpush1.msra.mxu0 %v458
    %1213 = vmatprep.subr.mxu0 0.0
    %1214 = vmatpush1.msra.mxu0 %v459
    %1215 = vmatprep.subr.mxu0 0.0
    %1216 = vmatpush1.msra.mxu0 %v460
    %1217 = vmatprep.subr.mxu0 0.0
    %1218 = vmatpush1.msra.mxu0 %v461
    %1219 = vmatprep.subr.mxu0 0.0
    %1220 = vmatpush1.msra.mxu0 %v462
    %1221 = vmatprep.subr.mxu0 0.0
    %1222 = vmatpush1.msra.mxu0 0.0
    %1223 = vmatprep.subr.mxu0 0.0
    %1224 = vmatpush1.msra.mxu0 0.0
    %1225 = vmatprep.subr.mxu0 0.0
    %1226 = vmatpush1.msra.mxu0 0.0
    %1227 = vmatprep.subr.mxu0 0.0
    %1228 = vmatpush1.msra.mxu0 0.0
    %1229 = vmatprep.subr.mxu0 0.0
    %1230 = vmatpush1.msra.mxu0 0.0
    %1231 = vmatprep.subr.mxu0 0.0
    %1232 = vmatpush1.msra.mxu0 0.0
    %1233 = vmatprep.subr.mxu0 0.0
    %1234 = vmatpush1.msra.mxu0 0.0
    %1235 = vmatprep.subr.mxu0 0.0
    %1236 = vmatpush1.msra.mxu0 0.0
    %1237 = vmatprep.subr.mxu0 0.0
    %1238 = vmatpush1.msra.mxu0 0.0
    %1239 = vmatprep.subr.mxu0 0.0
    %1240 = vmatpush1.msra.mxu0 0.0
    %1241 = vmatprep.subr.mxu0 0.0
    %1242 = vmatpush1.msra.mxu0 0.0
    %1243 = vmatprep.subr.mxu0 0.0
    %1244 = vmatpush1.msra.mxu0 0.0
    %1245 = vmatprep.subr.mxu0 0.0
    %1246 = vmatpush1.msra.mxu0 0.0
    %1247 = vmatprep.subr.mxu0 0.0
    %1248 = vmatpush1.msra.mxu0 0.0
    %1249 = vmatprep.subr.mxu0 0.0
    %1250 = vmatpush1.msra.mxu0 0.0
    %1251 = vmatprep.subr.mxu0 0.0
    %1252 = vmatpush1.msra.mxu0 0.0
    %1253 = vmatprep.mubr.f32.mxu0 0.0
    %1254 = vmatmul.mubr.f32.gmra.mrb[0].mxu0 %v299
    %v1255 = vpop.f32.mrb[0].mxu0
    %v1256 = vadd.f32 0.0, %v1255
    %v1257 = vpop.f32.mrb[0].mxu0
    %1258 = vdwg.mxu0
    %1259 = vmatprep.subr.mxu0 0.0
    %1260 = vmatpush1.msra.mxu0 %v463
    %1261 = vmatprep.subr.mxu0 0.0
    %1262 = vmatpush1.msra.mxu0 %v464
    %1263 = vmatprep.subr.mxu0 0.0
    %1264 = vmatpush1.msra.mxu0 %v465
    %1265 = vmatprep.subr.mxu0 0.0
    %1266 = vmatpush1.msra.mxu0 %v466
    %1267 = vmatprep.subr.mxu0 0.0
    %1268 = vmatpush1.msra.mxu0 %v467
    %1269 = vmatprep.subr.mxu0 0.0
    %1270 = vmatpush1.msra.mxu0 %v468
    %1271 = vmatprep.subr.mxu0 0.0
    %1272 = vmatpush1.msra.mxu0 %v469
    %1273 = vmatprep.subr.mxu0 0.0
    %1274 = vmatpush1.msra.mxu0 %v470
    %1275 = vmatprep.subr.mxu0 0.0
    %1276 = vmatpush1.msra.mxu0 %v471
    %1277 = vmatprep.subr.mxu0 0.0
    %1278 = vmatpush1.msra.mxu0 %v472
    %1279 = vmatprep.subr.mxu0 0.0
    %1280 = vmatpush1.msra.mxu0 %v473
    %1281 = vmatprep.subr.mxu0 0.0
    %1282 = vmatpush1.msra.mxu0 %v474
    %1283 = vmatprep.subr.mxu0 0.0
    %1284 = vmatpush1.msra.mxu0 %v475
    %1285 = vmatprep.subr.mxu0 0.0
    %1286 = vmatpush1.msra.mxu0 %v476
    %1287 = vmatprep.subr.mxu0 0.0
    %1288 = vmatpush1.msra.mxu0 %v477
    %1289 = vmatprep.subr.mxu0 0.0
    %1290 = vmatpush1.msra.mxu0 %v478
    %1291 = vmatprep.subr.mxu0 0.0
    %1292 = vmatpush1.msra.mxu0 0.0
    %1293 = vmatprep.subr.mxu0 0.0
    %1294 = vmatpush1.msra.mxu0 0.0
    %1295 = vmatprep.subr.mxu0 0.0
    %1296 = vmatpush1.msra.mxu0 0.0
    %1297 = vmatprep.subr.mxu0 0.0
    %1298 = vmatpush1.msra.mxu0 0.0
    %1299 = vmatprep.subr.mxu0 0.0
    %1300 = vmatpush1.msra.mxu0 0.0
    %1301 = vmatprep.subr.mxu0 0.0
    %1302 = vmatpush1.msra.mxu0 0.0
    %1303 = vmatprep.subr.mxu0 0.0
    %1304 = vmatpush1.msra.mxu0 0.0
    %1305 = vmatprep.subr.mxu0 0.0
    %1306 = vmatpush1.msra.mxu0 0.0
    %1307 = vmatprep.subr.mxu0 0.0
    %1308 = vmatpush1.msra.mxu0 0.0
    %1309 = vmatprep.subr.mxu0 0.0
    %1310 = vmatpush1.msra.mxu0 0.0
    %1311 = vmatprep.subr.mxu0 0.0
    %1312 = vmatpush1.msra.mxu0 0.0
    %1313 = vmatprep.subr.mxu0 0.0
    %1314 = vmatpush1.msra.mxu0 0.0
    %1315 = vmatprep.subr.mxu0 0.0
    %1316 = vmatpush1.msra.mxu0 0.0
    %1317 = vmatprep.subr.mxu0 0.0
    %1318 = vmatpush1.msra.mxu0 0.0
    %1319 = vmatprep.subr.mxu0 0.0
    %1320 = vmatpush1.msra.mxu0 0.0
    %1321 = vmatprep.subr.mxu0 0.0
    %1322 = vmatpush1.msra.mxu0 0.0
    %1323 = vmatprep.mubr.f32.mxu0 0.0
    %1324 = vmatmul.mubr.f32.gmra.mrb[0].mxu0 %v282
    %v1325 = vpop.f32.mrb[0].mxu0
    %v1326 = vadd.f32 0.0, %v1325
    %v1327 = vpop.f32.mrb[0].mxu0
    %1328 = vdwg.mxu0
    %1329 = vmatprep.subr.mxu0 0.0
    %1330 = vmatpush1.msra.mxu0 %v479
    %1331 = vmatprep.subr.mxu0 0.0
    %1332 = vmatpush1.msra.mxu0 %v480
    %1333 = vmatprep.subr.mxu0 0.0
    %1334 = vmatpush1.msra.mxu0 %v481
    %1335 = vmatprep.subr.mxu0 0.0
    %1336 = vmatpush1.msra.mxu0 %v482
    %1337 = vmatprep.subr.mxu0 0.0
    %1338 = vmatpush1.msra.mxu0 %v483
    %1339 = vmatprep.subr.mxu0 0.0
    %1340 = vmatpush1.msra.mxu0 %v484
    %1341 = vmatprep.subr.mxu0 0.0
    %1342 = vmatpush1.msra.mxu0 %v485
    %1343 = vmatprep.subr.mxu0 0.0
    %1344 = vmatpush1.msra.mxu0 %v486
    %1345 = vmatprep.subr.mxu0 0.0
    %1346 = vmatpush1.msra.mxu0 %v487
    %1347 = vmatprep.subr.mxu0 0.0
    %1348 = vmatpush1.msra.mxu0 %v488
    %1349 = vmatprep.subr.mxu0 0.0
    %1350 = vmatpush1.msra.mxu0 %v489
    %1351 = vmatprep.subr.mxu0 0.0
    %1352 = vmatpush1.msra.mxu0 %v490
    %1353 = vmatprep.subr.mxu0 0.0
    %1354 = vmatpush1.msra.mxu0 %v491
    %1355 = vmatprep.subr.mxu0 0.0
    %1356 = vmatpush1.msra.mxu0 %v492
    %1357 = vmatprep.subr.mxu0 0.0
    %1358 = vmatpush1.msra.mxu0 %v493
    %1359 = vmatprep.subr.mxu0 0.0
    %1360 = vmatpush1.msra.mxu0 %v494
    %1361 = vmatprep.subr.mxu0 0.0
    %1362 = vmatpush1.msra.mxu0 0.0
    %1363 = vmatprep.subr.mxu0 0.0
    %1364 = vmatpush1.msra.mxu0 0.0
    %1365 = vmatprep.subr.mxu0 0.0
    %1366 = vmatpush1.msra.mxu0 0.0
    %1367 = vmatprep.subr.mxu0 0.0
    %1368 = vmatpush1.msra.mxu0 0.0
    %1369 = vmatprep.subr.mxu0 0.0
    %1370 = vmatpush1.msra.mxu0 0.0
    %1371 = vmatprep.subr.mxu0 0.0
    %1372 = vmatpush1.msra.mxu0 0.0
    %1373 = vmatprep.subr.mxu0 0.0
    %1374 = vmatpush1.msra.mxu0 0.0
    %1375 = vmatprep.subr.mxu0 0.0
    %1376 = vmatpush1.msra.mxu0 0.0
    %1377 = vmatprep.subr.mxu0 0.0
    %1378 = vmatpush1.msra.mxu0 0.0
    %1379 = vmatprep.subr.mxu0 0.0
    %1380 = vmatpush1.msra.mxu0 0.0
    %1381 = vmatprep.subr.mxu0 0.0
    %1382 = vmatpush1.msra.mxu0 0.0
    %1383 = vmatprep.subr.mxu0 0.0
    %1384 = vmatpush1.msra.mxu0 0.0
    %1385 = vmatprep.subr.mxu0 0.0
    %1386 = vmatpush1.msra.mxu0 0.0
    %1387 = vmatprep.subr.mxu0 0.0
    %1388 = vmatpush1.msra.mxu0 0.0
    %1389 = vmatprep.subr.mxu0 0.0
    %1390 = vmatpush1.msra.mxu0 0.0
    %1391 = vmatprep.subr.mxu0 0.0
    %1392 = vmatpush1.msra.mxu0 0.0
    %1393 = vmatprep.mubr.f32.mxu0 0.0
    %1394 = vmatmul.mubr.f32.gmra.mrb[0].mxu0 %v300
    %v1395 = vpop.f32.mrb[0].mxu0
    %v1396 = vadd.f32 0.0, %v1395
    %v1397 = vpop.f32.mrb[0].mxu0
    %1398 = vdwg.mxu0
    %1399 = vmatprep.subr.mxu0 0.0
    %1400 = vmatpush1.msra.mxu0 %v495
    %1401 = vmatprep.subr.mxu0 0.0
    %1402 = vmatpush1.msra.mxu0 %v496
    %1403 = vmatprep.subr.mxu0 0.0
    %1404 = vmatpush1.msra.mxu0 %v497
    %1405 = vmatprep.subr.mxu0 0.0
    %1406 = vmatpush1.msra.mxu0 %v498
    %1407 = vmatprep.subr.mxu0 0.0
    %1408 = vmatpush1.msra.mxu0 %v499
    %1409 = vmatprep.subr.mxu0 0.0
    %1410 = vmatpush1.msra.mxu0 %v500
    %1411 = vmatprep.subr.mxu0 0.0
    %1412 = vmatpush1.msra.mxu0 %v501
    %1413 = vmatprep.subr.mxu0 0.0
    %1414 = vmatpush1.msra.mxu0 %v502
    %1415 = vmatprep.subr.mxu0 0.0
    %1416 = vmatpush1.msra.mxu0 %v503
    %1417 = vmatprep.subr.mxu0 0.0
    %1418 = vmatpush1.msra.mxu0 %v504
    %1419 = vmatprep.subr.mxu0 0.0
    %1420 = vmatpush1.msra.mxu0 %v505
    %1421 = vmatprep.subr.mxu0 0.0
    %1422 = vmatpush1.msra.mxu0 %v506
    %1423 = vmatprep.subr.mxu0 0.0
    %1424 = vmatpush1.msra.mxu0 %v507
    %1425 = vmatprep.subr.mxu0 0.0
    %1426 = vmatpush1.msra.mxu0 %v508
    %1427 = vmatprep.subr.mxu0 0.0
    %1428 = vmatpush1.msra.mxu0 %v509
    %1429 = vmatprep.subr.mxu0 0.0
    %1430 = vmatpush1.msra.mxu0 %v510
    %1431 = vmatprep.subr.mxu0 0.0
    %1432 = vmatpush1.msra.mxu0 0.0
    %1433 = vmatprep.subr.mxu0 0.0
    %1434 = vmatpush1.msra.mxu0 0.0
    %1435 = vmatprep.subr.mxu0 0.0
    %1436 = vmatpush1.msra.mxu0 0.0
    %1437 = vmatprep.subr.mxu0 0.0
    %1438 = vmatpush1.msra.mxu0 0.0
    %1439 = vmatprep.subr.mxu0 0.0
    %1440 = vmatpush1.msra.mxu0 0.0
    %1441 = vmatprep.subr.mxu0 0.0
    %1442 = vmatpush1.msra.mxu0 0.0
    %1443 = vmatprep.subr.mxu0 0.0
    %1444 = vmatpush1.msra.mxu0 0.0
    %1445 = vmatprep.subr.mxu0 0.0
    %1446 = vmatpush1.msra.mxu0 0.0
    %1447 = vmatprep.subr.mxu0 0.0
    %1448 = vmatpush1.msra.mxu0 0.0
    %1449 = vmatprep.subr.mxu0 0.0
    %1450 = vmatpush1.msra.mxu0 0.0
    %1451 = vmatprep.subr.mxu0 0.0
    %1452 = vmatpush1.msra.mxu0 0.0
    %1453 = vmatprep.subr.mxu0 0.0
    %1454 = vmatpush1.msra.mxu0 0.0
    %1455 = vmatprep.subr.mxu0 0.0
    %1456 = vmatpush1.msra.mxu0 0.0
    %1457 = vmatprep.subr.mxu0 0.0
    %1458 = vmatpush1.msra.mxu0 0.0
    %1459 = vmatprep.subr.mxu0 0.0
    %1460 = vmatpush1.msra.mxu0 0.0
    %1461 = vmatprep.subr.mxu0 0.0
    %1462 = vmatpush1.msra.mxu0 0.0
    %1463 = vmatprep.mubr.f32.mxu0 0.0
    %1464 = vmatmul.mubr.f32.gmra.mrb[0].mxu0 %v291
    %v1465 = vpop.f32.mrb[0].mxu0
    %v1466 = vadd.f32 0.0, %v1465
    %v1467 = vpop.f32.mrb[0].mxu0
    %1468 = vdwg.mxu0
    %1469 = vmatprep.subr.mxu0 0.0
    %1470 = vmatpush1.msra.mxu0 %v511
    %1471 = vmatprep.subr.mxu0 0.0
    %1472 = vmatpush1.msra.mxu0 %v512
    %1473 = vmatprep.subr.mxu0 0.0
    %1474 = vmatpush1.msra.mxu0 %v513
    %1475 = vmatprep.subr.mxu0 0.0
    %1476 = vmatpush1.msra.mxu0 %v514
    %1477 = vmatprep.subr.mxu0 0.0
    %1478 = vmatpush1.msra.mxu0 %v515
    %1479 = vmatprep.subr.mxu0 0.0
    %1480 = vmatpush1.msra.mxu0 %v516
    %1481 = vmatprep.subr.mxu0 0.0
    %1482 = vmatpush1.msra.mxu0 %v517
    %1483 = vmatprep.subr.mxu0 0.0
    %1484 = vmatpush1.msra.mxu0 %v518
    %1485 = vmatprep.subr.mxu0 0.0
    %1486 = vmatpush1.msra.mxu0 %v519
    %1487 = vmatprep.subr.mxu0 0.0
    %1488 = vmatpush1.msra.mxu0 %v520
    %1489 = vmatprep.subr.mxu0 0.0
    %1490 = vmatpush1.msra.mxu0 %v521
    %1491 = vmatprep.subr.mxu0 0.0
    %1492 = vmatpush1.msra.mxu0 %v522
    %1493 = vmatprep.subr.mxu0 0.0
    %1494 = vmatpush1.msra.mxu0 %v523
    %1495 = vmatprep.subr.mxu0 0.0
    %1496 = vmatpush1.msra.mxu0 %v524
    %1497 = vmatprep.subr.mxu0 0.0
    %1498 = vmatpush1.msra.mxu0 %v525
    %1499 = vmatprep.subr.mxu0 0.0
    %1500 = vmatpush1.msra.mxu0 %v526
    %1501 = vmatprep.subr.mxu0 0.0
    %1502 = vmatpush1.msra.mxu0 0.0
    %1503 = vmatprep.subr.mxu0 0.0
    %1504 = vmatpush1.msra.mxu0 0.0
    %1505 = vmatprep.subr.mxu0 0.0
    %1506 = vmatpush1.msra.mxu0 0.0
    %1507 = vmatprep.subr.mxu0 0.0
    %1508 = vmatpush1.msra.mxu0 0.0
    %1509 = vmatprep.subr.mxu0 0.0
    %1510 = vmatpush1.msra.mxu0 0.0
    %1511 = vmatprep.subr.mxu0 0.0
    %1512 = vmatpush1.msra.mxu0 0.0
    %1513 = vmatprep.subr.mxu0 0.0
    %1514 = vmatpush1.msra.mxu0 0.0
    %1515 = vmatprep.subr.mxu0 0.0
    %1516 = vmatpush1.msra.mxu0 0.0
    %1517 = vmatprep.subr.mxu0 0.0
    %1518 = vmatpush1.msra.mxu0 0.0
    %1519 = vmatprep.subr.mxu0 0.0
    %1520 = vmatpush1.msra.mxu0 0.0
    %1521 = vmatprep.subr.mxu0 0.0
    %1522 = vmatpush1.msra.mxu0 0.0
    %1523 = vmatprep.subr.mxu0 0.0
    %1524 = vmatpush1.msra.mxu0 0.0
    %1525 = vmatprep.subr.mxu0 0.0
    %1526 = vmatpush1.msra.mxu0 0.0
    %1527 = vmatprep.subr.mxu0 0.0
    %1528 = vmatpush1.msra.mxu0 0.0
    %1529 = vmatprep.subr.mxu0 0.0
    %1530 = vmatpush1.msra.mxu0 0.0
    %1531 = vmatprep.subr.mxu0 0.0
    %1532 = vmatpush1.msra.mxu0 0.0
    %1533 = vmatprep.mubr.f32.mxu0 0.0
    %1534 = vmatmul.mubr.f32.gmra.mrb[0].mxu0 %v301
    %v1535 = vpop.f32.mrb[0].mxu0
    %v1536 = vadd.f32 0.0, %v1535
    %v1537 = vpop.f32.mrb[0].mxu0
    %1538 = vdwg.mxu0
    %1539 = vmatprep.subr.mxu0 0.0
    %1540 = vmatpush1.msra.mxu0 %v527
    %1541 = vmatprep.subr.mxu0 0.0
    %1542 = vmatpush1.msra.mxu0 %v528
    %1543 = vmatprep.subr.mxu0 0.0
    %1544 = vmatpush1.msra.mxu0 %v529
    %1545 = vmatprep.subr.mxu0 0.0
    %1546 = vmatpush1.msra.mxu0 %v530
    %1547 = vmatprep.subr.mxu0 0.0
    %1548 = vmatpush1.msra.mxu0 %v531
    %1549 = vmatprep.subr.mxu0 0.0
    %1550 = vmatpush1.msra.mxu0 %v532
    %1551 = vmatprep.subr.mxu0 0.0
    %1552 = vmatpush1.msra.mxu0 %v533
    %1553 = vmatprep.subr.mxu0 0.0
    %1554 = vmatpush1.msra.mxu0 %v534
    %1555 = vmatprep.subr.mxu0 0.0
    %1556 = vmatpush1.msra.mxu0 %v535
    %1557 = vmatprep.subr.mxu0 0.0
    %1558 = vmatpush1.msra.mxu0 %v536
    %1559 = vmatprep.subr.mxu0 0.0
    %1560 = vmatpush1.msra.mxu0 %v537
    %1561 = vmatprep.subr.mxu0 0.0
    %1562 = vmatpush1.msra.mxu0 %v538
    %1563 = vmatprep.subr.mxu0 0.0
    %1564 = vmatpush1.msra.mxu0 %v539
    %1565 = vmatprep.subr.mxu0 0.0
    %1566 = vmatpush1.msra.mxu0 %v540
    %1567 = vmatprep.subr.mxu0 0.0
    %1568 = vmatpush1.msra.mxu0 %v541
    %1569 = vmatprep.subr.mxu0 0.0
    %1570 = vmatpush1.msra.mxu0 %v542
    %1571 = vmatprep.subr.mxu0 0.0
    %1572 = vmatpush1.msra.mxu0 0.0
    %1573 = vmatprep.subr.mxu0 0.0
    %1574 = vmatpush1.msra.mxu0 0.0
    %1575 = vmatprep.subr.mxu0 0.0
    %1576 = vmatpush1.msra.mxu0 0.0
    %1577 = vmatprep.subr.mxu0 0.0
    %1578 = vmatpush1.msra.mxu0 0.0
    %1579 = vmatprep.subr.mxu0 0.0
    %1580 = vmatpush1.msra.mxu0 0.0
    %1581 = vmatprep.subr.mxu0 0.0
    %1582 = vmatpush1.msra.mxu0 0.0
    %1583 = vmatprep.subr.mxu0 0.0
    %1584 = vmatpush1.msra.mxu0 0.0
    %1585 = vmatprep.subr.mxu0 0.0
    %1586 = vmatpush1.msra.mxu0 0.0
    %1587 = vmatprep.subr.mxu0 0.0
    %1588 = vmatpush1.msra.mxu0 0.0
    %1589 = vmatprep.subr.mxu0 0.0
    %1590 = vmatpush1.msra.mxu0 0.0
    %1591 = vmatprep.subr.mxu0 0.0
    %1592 = vmatpush1.msra.mxu0 0.0
    %1593 = vmatprep.subr.mxu0 0.0
    %1594 = vmatpush1.msra.mxu0 0.0
    %1595 = vmatprep.subr.mxu0 0.0
    %1596 = vmatpush1.msra.mxu0 0.0
    %1597 = vmatprep.subr.mxu0 0.0
    %1598 = vmatpush1.msra.mxu0 0.0
    %1599 = vmatprep.subr.mxu0 0.0
    %1600 = vmatpush1.msra.mxu0 0.0
    %1601 = vmatprep.subr.mxu0 0.0
    %1602 = vmatpush1.msra.mxu0 0.0
    %1603 = vmatprep.mubr.f32.mxu0 0.0
    %1604 = vmatmul.mubr.f32.gmra.mrb[0].mxu0 %v298
    %v1605 = vpop.f32.mrb[0].mxu0
    %v1606 = vadd.f32 0.0, %v1605
    %v1607 = vpop.f32.mrb[0].mxu0
    %1608 = vdwg.mxu0
    %1609 = vmatprep.subr.mxu0 0.0
    %1610 = vmatpush1.msra.mxu0 %v543
    %1611 = vmatprep.subr.mxu0 0.0
    %1612 = vmatpush1.msra.mxu0 %v544
    %1613 = vmatprep.subr.mxu0 0.0
    %1614 = vmatpush1.msra.mxu0 %v545
    %1615 = vmatprep.subr.mxu0 0.0
    %1616 = vmatpush1.msra.mxu0 %v546
    %1617 = vmatprep.subr.mxu0 0.0
    %1618 = vmatpush1.msra.mxu0 %v547
    %1619 = vmatprep.subr.mxu0 0.0
    %1620 = vmatpush1.msra.mxu0 %v548
    %1621 = vmatprep.subr.mxu0 0.0
    %1622 = vmatpush1.msra.mxu0 %v549
    %1623 = vmatprep.subr.mxu0 0.0
    %1624 = vmatpush1.msra.mxu0 %v550
    %1625 = vmatprep.subr.mxu0 0.0
    %1626 = vmatpush1.msra.mxu0 %v551
    %1627 = vmatprep.subr.mxu0 0.0
    %1628 = vmatpush1.msra.mxu0 %v552
    %1629 = vmatprep.subr.mxu0 0.0
    %1630 = vmatpush1.msra.mxu0 %v553
    %1631 = vmatprep.subr.mxu0 0.0
    %1632 = vmatpush1.msra.mxu0 %v554
    %1633 = vmatprep.subr.mxu0 0.0
    %1634 = vmatpush1.msra.mxu0 %v555
    %1635 = vmatprep.subr.mxu0 0.0
    %1636 = vmatpush1.msra.mxu0 %v556
    %1637 = vmatprep.subr.mxu0 0.0
    %1638 = vmatpush1.msra.mxu0 %v557
    %1639 = vmatprep.subr.mxu0 0.0
    %1640 = vmatpush1.msra.mxu0 %v558
    %1641 = vmatprep.subr.mxu0 0.0
    %1642 = vmatpush1.msra.mxu0 0.0
    %1643 = vmatprep.subr.mxu0 0.0
    %1644 = vmatpush1.msra.mxu0 0.0
    %1645 = vmatprep.subr.mxu0 0.0
    %1646 = vmatpush1.msra.mxu0 0.0
    %1647 = vmatprep.subr.mxu0 0.0
    %1648 = vmatpush1.msra.mxu0 0.0
    %1649 = vmatprep.subr.mxu0 0.0
    %1650 = vmatpush1.msra.mxu0 0.0
    %1651 = vmatprep.subr.mxu0 0.0
    %1652 = vmatpush1.msra.mxu0 0.0
    %1653 = vmatprep.subr.mxu0 0.0
    %1654 = vmatpush1.msra.mxu0 0.0
    %1655 = vmatprep.subr.mxu0 0.0
    %1656 = vmatpush1.msra.mxu0 0.0
    %1657 = vmatprep.subr.mxu0 0.0
    %1658 = vmatpush1.msra.mxu0 0.0
    %1659 = vmatprep.subr.mxu0 0.0
    %1660 = vmatpush1.msra.mxu0 0.0
    %1661 = vmatprep.subr.mxu0 0.0
    %1662 = vmatpush1.msra.mxu0 0.0
    %1663 = vmatprep.subr.mxu0 0.0
    %1664 = vmatpush1.msra.mxu0 0.0
    %1665 = vmatprep.subr.mxu0 0.0
    %1666 = vmatpush1.msra.mxu0 0.0
    %1667 = vmatprep.subr.mxu0 0.0
    %1668 = vmatpush1.msra.mxu0 0.0
    %1669 = vmatprep.subr.mxu0 0.0
    %1670 = vmatpush1.msra.mxu0 0.0
    %1671 = vmatprep.subr.mxu0 0.0
    %1672 = vmatpush1.msra.mxu0 0.0
    %1673 = vmatprep.mubr.f32.mxu0 0.0
    %1674 = vmatmul.mubr.f32.gmra.mrb[0].mxu0 %v302
    %v1675 = vpop.f32.mrb[0].mxu0
    %v1676 = vadd.f32 0.0, %v1675
    %v1677 = vpop.f32.mrb[0].mxu0
    %1678 = vdwg.mxu0
    %v1679 = vmul.f32 %v626, 0.125
    %v1680 = vmul.f32 %v696, 0.125
    %v1681 = vmul.f32 %v766, 0.125
    %v1682 = vmul.f32 %v836, 0.125
    %v1683 = vmul.f32 %v906, 0.125
    %v1684 = vmul.f32 %v976, 0.125
    %v1685 = vmul.f32 %v1046, 0.125
    %v1686 = vmul.f32 %v1116, 0.125
    %v1687 = vmul.f32 %v1186, 0.125
    %v1688 = vmul.f32 %v1256, 0.125
    %v1689 = vmul.f32 %v1326, 0.125
    %v1690 = vmul.f32 %v1396, 0.125
    %v1691 = vmul.f32 %v1466, 0.125
    %v1692 = vmul.f32 %v1536, 0.125
    %v1693 = vmul.f32 %v1606, 0.125
    %v1694 = vmul.f32 %v1676, 0.125
    %1695 = vst [vmem:[#allocation7] sm:$0xf] %v1679
    %1696 = vst [vmem:[#allocation7 + $0x4] sm:$0xf] %v1680
    %1697 = vst [vmem:[#allocation7 + $0x8] sm:$0xf] %v1681
    %1698 = vst [vmem:[#allocation7 + $0xc] sm:$0xf] %v1682
    %1699 = vst [vmem:[#allocation7 + $0x10] sm:$0xf] %v1683
    %1700 = vst [vmem:[#allocation7 + $0x14] sm:$0xf] %v1684
    %1701 = vst [vmem:[#allocation7 + $0x18] sm:$0xf] %v1685
    %1702 = vst [vmem:[#allocation7 + $0x1c] sm:$0xf] %v1686
    %1703 = vst [vmem:[#allocation7 + $0x20] sm:$0xf] %v1687
    %1704 = vst [vmem:[#allocation7 + $0x24] sm:$0xf] %v1688
    %1705 = vst [vmem:[#allocation7 + $0x28] sm:$0xf] %v1689
    %1706 = vst [vmem:[#allocation7 + $0x2c] sm:$0xf] %v1690
    %1707 = vst [vmem:[#allocation7 + $0x30] sm:$0xf] %v1691
    %1708 = vst [vmem:[#allocation7 + $0x34] sm:$0xf] %v1692
    %1709 = vst [vmem:[#allocation7 + $0x38] sm:$0xf] %v1693
    %1710 = vst [vmem:[#allocation7 + $0x3c] sm:$0xf] %v1694
    // Predicated region
    $region18: #{tpu_custom_call.1} parent=1 // pred_check
      _
    $region19: #{tpu_custom_call.1} parent=1 // pred_check_branch
      %1712 = sbr.rel (0) target = $region21
    $region20: #{tpu_custom_call.1} parent=1 // pred_region
      %s1714 = ssub.s32 1024, 1024
      %1715 = vsyncadd [#allocation4], %s1714
      %s1716 = sshll.u32 [#allocation7], 4
      %s1717 = int_to_ptr.vmem [resolvable:$true] %s1716
      %1722 = dma.vmem_to_hbm [thread:$0]  %s1717, 1024, %s2, [#allocation4], 64, 64, 4
    $region21: #{tpu_custom_call.1} parent=1 // pred_fallthru
      _
    // Predicated region
    $region22: #{tpu_custom_call.1} parent=1 // pred_check
      _
    $region23: #{tpu_custom_call.1} parent=1 // pred_check_branch
      %1724 = sbr.rel (0) target = $region25
    $region24: #{tpu_custom_call.1} parent=1 // pred_region
      %1725 = dma.done [#allocation4], 1024
    $region25: #{tpu_custom_call.1} parent=1 // pred_fallthru
      _
    %1726 = vsyncpa [#allocation3], 1
    %1727 = vsyncpa [#allocation6], 1
    %1728 = vsyncpa [#allocation4], 1

</llo_original>
